<compile_context>
chip_gen: v5e
topology: v5e:2x2
jax: 0.10.0
libtpu: 0.0.40
codegen_flags: <defaults>
</compile_context>

<pallas_src>
import jax
import jax.numpy as jnp
from jax.experimental import pallas as pl
from jax.experimental.pallas import tpu as pltpu


def _attention_kernel(pq_ref, pm_ref, locc_ref, wloc_ref, v_ref, bias_ref,
                      mem_ref, ctx_ref, w_ref):
    # Per grid step (Bt batch elements):
    #   pq_ref   (Bt, 1, H)   processed query (hoisted query @ Wq^T)
    #   pm_ref   (Bt, L, H)   processed_memory
    #   locc_ref (Bt, L, F)   location-conv features (channels-last)
    #   wloc_ref (F, H)       loc_linear weight (transposed)
    #   v_ref    (1, H)       v weight
    #   bias_ref (Bt, 1, L)   additive mask bias (0 valid / -1e30 masked)
    #   mem_ref  (Bt, L, M)   memory
    # Outputs:
    #   ctx_ref  (Bt, 1, M)   attention context
    #   w_ref    (Bt, 1, L)   attention weights
    f32 = jnp.float32
    Bt, L, H = pm_ref.shape
    F = locc_ref.shape[-1]
    M = mem_ref.shape[-1]

    # Location features -> hidden: one large (Bt*L, F) x (F, H) MXU matmul.
    locc = locc_ref[...].reshape(Bt * L, F).astype(f32)
    loc_h = jnp.dot(locc, wloc_ref[...].astype(f32),
                    preferred_element_type=f32).reshape(Bt, L, H)

    pq = pq_ref[...].astype(f32)                                    # (Bt, 1, H)
    pm = pm_ref[...].astype(f32)                                    # (Bt, L, H)
    t = jnp.tanh(pm + loc_h + pq)                                   # (Bt, L, H)

    # Energy as lane-dense (Bt, 1, L) rows (flash-attention einsum pattern).
    v = jnp.broadcast_to(v_ref[...].astype(f32)[None], (Bt, 1, H))  # (Bt, 1, H)
    e = jnp.einsum('bnh,blh->bnl', v, t,
                   preferred_element_type=f32)                      # (Bt, 1, L)
    e = e + bias_ref[...]                                           # mask bias

    m = jnp.max(e, axis=2, keepdims=True)
    p = jnp.exp(e - m)
    denom = jnp.sum(p, axis=2, keepdims=True)
    w = p * pl.reciprocal(denom, approx=True)                       # (Bt, 1, L)

    mem = mem_ref[...].astype(f32)                                  # (Bt, L, M)
    ctx = jnp.einsum('bnl,blm->bnm', w, mem,
                     preferred_element_type=f32)                    # (Bt, 1, M)

    ctx_ref[...] = ctx.astype(ctx_ref.dtype)
    w_ref[...] = w.astype(w_ref.dtype)


def _pick_batch_tile(B, L, M, F, H, vmem_budget_bytes=8 * 1024 * 1024):
    """Choose batch elements per grid step from a conservative VMEM budget.

    Budget covers the double-buffered streamed blocks plus in-kernel f32
    temporaries (t / loc_h / p), and stays well below v5e's 16 MiB default
    scoped-VMEM limit and v7x's 64 MiB physical VMEM.
    """
    per_elem_stream = 4 * (L * H + L * F + L * M + H + L + M + L)   # f32 bytes
    per_elem_temp = 4 * 4 * L * H                                   # t, loc_h, p + slack
    bt = max(1, vmem_budget_bytes // (2 * per_elem_stream + per_elem_temp))
    bt = min(bt, B)
    if B >= 2:
        # Keep at least 2 grid steps so the "parallel" axis feeds both
        # TensorCores on v7x (harmless on v5e/v6e).
        bt = max(1, min(bt, B // 2))
    while B % bt:                                                   # prefer exact tiling
        bt -= 1
    return bt


def attention_forward(query, memory, processed_memory, attn_history, mask,
                      wq_t, loc_conv_w, wloc_t, v_row, *, batch_tile=None):
    """Fused location-aware attention forward.

    query: (B, Q); memory: (B, L, M); processed_memory: (B, L, H);
    attn_history: (B, 2, L); mask: (B, L) bool (True = masked).
    wq_t: (Q, H); loc_conv_w: (F, 2, K); wloc_t: (F, H); v_row: (1, H).
    Returns (attn_context (B, M), attn_weights (B, L)).
    """
    B, L, M = memory.shape
    H = wq_t.shape[1]
    Floc, _, K = loc_conv_w.shape
    pad = (K - 1) // 2
    f32 = jnp.float32

    # TODO(synk): the tiny location Conv1d is evaluated via lax.conv in the
    # wrapper (channels-last output, so no host-side transpose) rather than
    # fused into the Pallas kernel (halo handling not worth fusing).
    loc_feat = jax.lax.conv_general_dilated(
        attn_history.astype(f32), loc_conv_w.astype(f32),
        window_strides=(1,), padding=[(pad, pad)],
        dimension_numbers=("NCH", "OIH", "NHC"))                    # (B, L, F)

    # Query projection hoisted out of the kernel (review item): one matmul.
    pq = jnp.dot(query.astype(f32), wq_t.astype(f32)).reshape(B, 1, H)

    # Mask as an additive bias: 0 for valid, -1e30 for masked positions.
    bias = jnp.where(mask, f32(-1e30), f32(0.0)).reshape(B, 1, L)

    Bt = batch_tile if batch_tile is not None else _pick_batch_tile(B, L, M, Floc, H)
    grid = (pl.cdiv(B, Bt),)
    n_steps = grid[0]

    flops = B * (2 * L * Floc * H + 2 * L * H + 2 * L * M)
    trans = B * (L * H + L)
    bytes_accessed = (4 * B * (H + L * H + L * Floc + L + L * M + M + L)
                      + 4 * n_steps * (Floc * H + H))

    ctx3, w3 = pl.pallas_call(
        _attention_kernel,
        out_shape=(
            jax.ShapeDtypeStruct((B, 1, M), f32),
            jax.ShapeDtypeStruct((B, 1, L), f32),
        ),
        grid_spec=pltpu.PrefetchScalarGridSpec(
            num_scalar_prefetch=0,
            grid=grid,
            in_specs=[
                pl.BlockSpec((Bt, 1, H), lambda b: (b, 0, 0)),      # processed query
                pl.BlockSpec((Bt, L, H), lambda b: (b, 0, 0)),      # processed_memory
                pl.BlockSpec((Bt, L, Floc), lambda b: (b, 0, 0)),   # loc features
                pl.BlockSpec((Floc, H), lambda b: (0, 0)),          # wloc_t
                pl.BlockSpec((1, H), lambda b: (0, 0)),             # v
                pl.BlockSpec((Bt, 1, L), lambda b: (b, 0, 0)),      # mask bias
                pl.BlockSpec((Bt, L, M), lambda b: (b, 0, 0)),      # memory
            ],
            out_specs=[
                pl.BlockSpec((Bt, 1, M), lambda b: (b, 0, 0)),      # context
                pl.BlockSpec((Bt, 1, L), lambda b: (b, 0, 0)),      # weights
            ],
        ),
        compiler_params=pltpu.CompilerParams(
            dimension_semantics=("parallel",)),
        cost_estimate=pl.CostEstimate(
            flops=flops, transcendentals=trans, bytes_accessed=bytes_accessed),
    )(pq, processed_memory, loc_feat, wloc_t, v_row, bias, memory)

    return ctx3.reshape(B, M), w3.reshape(B, L)


def _reference(query, memory, processed_memory, attn_history, mask,
               wq_t, loc_conv_w, wloc_t, v_row):
    """Pure-JAX reference matching the PyTorch forward."""
    K = loc_conv_w.shape[-1]
    pad = (K - 1) // 2
    hp = jax.lax.Precision.HIGHEST
    pq = jnp.dot(query, wq_t, precision=hp)                          # (B, H)
    loc = jax.lax.conv_general_dilated(
        attn_history, loc_conv_w, (1,), [(pad, pad)],
        dimension_numbers=("NCH", "OIH", "NHC"))                     # (B, L, F)
    loc_h = jnp.einsum("blf,fh->blh", loc, wloc_t, precision=hp)
    t = jnp.tanh(pq[:, None, :] + loc_h + processed_memory)
    e = jnp.einsum("blh,h->bl", t, v_row[0], precision=hp)
    e = jnp.where(mask, -jnp.inf, e)
    w = jax.nn.softmax(e, axis=1)
    ctx = jnp.einsum("bl,blm->bm", w, memory, precision=hp)
    return ctx, w


if __name__ == "__main__":
    B, L = 8, 128
    query_dim, memory_dim, hidden_dim = 32, 32, 128
    n_location_filters, location_kernel_size = 16, 5

    key = jax.random.PRNGKey(0)
    ks = jax.random.split(key, 8)
    query = jax.random.normal(ks[0], (B, query_dim), jnp.float32)
    memory = jax.random.normal(ks[1], (B, L, memory_dim), jnp.float32)
    processed_memory = jax.random.normal(ks[2], (B, L, hidden_dim), jnp.float32)
    attn_history = jax.nn.softmax(
        jax.random.normal(ks[3], (B, 2, L), jnp.float32), axis=-1)

    # Padding mask (True = masked), like the PyTorch masked_fill_. No row is
    # fully masked (fully-masked rows are NaN in PyTorch too).
    lengths = jnp.array([L, L - 40, 96, 64, 100, L - 1, 32, 77], jnp.int32)
    mask = jnp.arange(L)[None, :] >= lengths[:, None]                # (B, L) bool

    # Parameters in the layout the kernel consumes (W^T); all layers bias=False.
    wq_t = 0.1 * jax.random.normal(ks[4], (query_dim, hidden_dim), jnp.float32)
    wloc_t = 0.1 * jax.random.normal(
        ks[5], (n_location_filters, hidden_dim), jnp.float32)
    v_row = 0.1 * jax.random.normal(ks[6], (1, hidden_dim), jnp.float32)
    loc_conv_w = 0.1 * jax.random.normal(
        ks[7], (n_location_filters, 2, location_kernel_size), jnp.float32)

    ctx, w = attention_forward(query, memory, processed_memory, attn_history,
                               mask, wq_t, loc_conv_w, wloc_t, v_row)
    ctx = jax.block_until_ready(ctx)
    w = jax.block_until_ready(w)

    ctx_ref, w_ref = _reference(query, memory, processed_memory, attn_history,
                                mask, wq_t, loc_conv_w, wloc_t, v_row)

    assert ctx.shape == (B, memory_dim) and w.shape == (B, L)
    assert bool(jnp.all(jnp.isfinite(w))) and bool(jnp.all(jnp.isfinite(ctx)))
    assert jnp.allclose(jnp.sum(w, axis=1), 1.0, atol=1e-2)
    # Tolerance covers MXU matmul rounding + approx-reciprocal softmax in the
    # kernel vs. the HIGHEST-precision XLA reference; a real indexing/fusion
    # bug would produce O(1) errors and still fail.
    assert jnp.allclose(w, w_ref, atol=2e-2, rtol=2e-2)
    assert jnp.allclose(ctx, ctx_ref, atol=2e-2, rtol=2e-2)
    print("KERNEL_OK")
</pallas_src>

<mosaic_0001>
module attributes {stable_mosaic.version = 11 : i64} {
  func.func @_attention_kernel(%arg0: i32, %arg1: memref<4x1x128xf32, #tpu.memory_space<vmem>>, %arg2: memref<4x128x128xf32, #tpu.memory_space<vmem>>, %arg3: memref<4x128x16xf32, #tpu.memory_space<vmem>>, %arg4: memref<16x128xf32, #tpu.memory_space<vmem>>, %arg5: memref<1x128xf32, #tpu.memory_space<vmem>>, %arg6: memref<4x1x128xf32, #tpu.memory_space<vmem>>, %arg7: memref<4x128x32xf32, #tpu.memory_space<vmem>>, %arg8: memref<4x1x32xf32, #tpu.memory_space<vmem>>, %arg9: memref<4x1x128xf32, #tpu.memory_space<vmem>>) attributes {dimension_semantics = [#tpu.dimension_semantics<parallel>], iteration_bounds = array<i64: 2>, scalar_prefetch = 0 : i64, scratch_operands = 0 : i64, tpu.core_type = #tpu.core_type<tc>, window_params = [{transform_indices = @transform_0, window_bounds = array<i64: 4, 1, 128>}, {transform_indices = @transform_1, window_bounds = array<i64: 4, 128, 128>}, {transform_indices = @transform_2, window_bounds = array<i64: 4, 128, 16>}, {pipeline_mode = #tpu.pipeline_mode<synchronous>, transform_indices = @transform_3, window_bounds = array<i64: 16, 128>}, {pipeline_mode = #tpu.pipeline_mode<synchronous>, transform_indices = @transform_4, window_bounds = array<i64: 1, 128>}, {transform_indices = @transform_5, window_bounds = array<i64: 4, 1, 128>}, {transform_indices = @transform_6, window_bounds = array<i64: 4, 128, 32>}, {transform_indices = @transform_7, window_bounds = array<i64: 4, 1, 32>}, {transform_indices = @transform_8, window_bounds = array<i64: 4, 1, 128>}]} {
    %c0 = arith.constant 0 : index
    %c0_0 = arith.constant 0 : index
    %c0_1 = arith.constant 0 : index
    %0 = vector.load %arg3[%c0, %c0_0, %c0_1] : memref<4x128x16xf32, #tpu.memory_space<vmem>>, vector<4x128x16xf32>
    %1 = vector.shape_cast %0 : vector<4x128x16xf32> to vector<512x16xf32>
    %c0_2 = arith.constant 0 : index
    %c0_3 = arith.constant 0 : index
    %2 = vector.load %arg4[%c0_2, %c0_3] : memref<16x128xf32, #tpu.memory_space<vmem>>, vector<16x128xf32>
    %cst = arith.constant dense<0.000000e+00> : vector<512x128xf32>
    %3 = tpu.matmul %1, %2, %cst {dimension_numbers = #tpu.dot_dimension_numbers<[1], [0], [0], [1], [0, 0, 1, 1], [], []>} : vector<512x16xf32>, vector<16x128xf32>, vector<512x128xf32> -> vector<512x128xf32>
    %4 = vector.shape_cast %3 : vector<512x128xf32> to vector<4x128x128xf32>
    %c0_4 = arith.constant 0 : index
    %c0_5 = arith.constant 0 : index
    %c0_6 = arith.constant 0 : index
    %5 = vector.load %arg1[%c0_4, %c0_5, %c0_6] : memref<4x1x128xf32, #tpu.memory_space<vmem>>, vector<4x1x128xf32>
    %c0_7 = arith.constant 0 : index
    %c0_8 = arith.constant 0 : index
    %c0_9 = arith.constant 0 : index
    %6 = vector.load %arg2[%c0_7, %c0_8, %c0_9] : memref<4x128x128xf32, #tpu.memory_space<vmem>>, vector<4x128x128xf32>
    %7 = arith.addf %6, %4 : vector<4x128x128xf32>
    %8 = vector.broadcast %5 : vector<4x1x128xf32> to vector<4x128x128xf32>
    %9 = arith.addf %7, %8 : vector<4x128x128xf32>
    %10 = math.tanh %9 : vector<4x128x128xf32>
    %c0_10 = arith.constant 0 : index
    %c0_11 = arith.constant 0 : index
    %11 = vector.load %arg5[%c0_10, %c0_11] : memref<1x128xf32, #tpu.memory_space<vmem>>, vector<1x128xf32>
    %12 = vector.shape_cast %11 : vector<1x128xf32> to vector<1x1x128xf32>
    %13 = vector.shape_cast %12 : vector<1x1x128xf32> to vector<1x1x128xf32>
    %14 = vector.broadcast %13 : vector<1x1x128xf32> to vector<4x1x128xf32>
    "tpu.trace_start"() <{level = 10 : i32, message = "bnh,blh->bnl"}> : () -> ()
    %cst_12 = arith.constant dense<0.000000e+00> : vector<4x1x128xf32>
    %15 = tpu.matmul %14, %10, %cst_12 {dimension_numbers = #tpu.dot_dimension_numbers<[2], [2], [1], [1], [0, 0, 0, 1, 1, 1], [0], [0]>} : vector<4x1x128xf32>, vector<4x128x128xf32>, vector<4x1x128xf32> -> vector<4x1x128xf32>
    "tpu.trace_stop"() : () -> ()
    %c0_13 = arith.constant 0 : index
    %c0_14 = arith.constant 0 : index
    %c0_15 = arith.constant 0 : index
    %16 = vector.load %arg6[%c0_13, %c0_14, %c0_15] : memref<4x1x128xf32, #tpu.memory_space<vmem>>, vector<4x1x128xf32>
    %17 = arith.addf %15, %16 : vector<4x1x128xf32>
    %cst_16 = arith.constant dense<0xFF800000> : vector<4x1xf32>
    %18 = vector.multi_reduction <maximumf>, %17, %cst_16 [2] : vector<4x1x128xf32> to vector<4x1xf32>
    %19 = vector.shape_cast %18 : vector<4x1xf32> to vector<4x1x1xf32>
    %20 = vector.broadcast %19 : vector<4x1x1xf32> to vector<4x1x128xf32>
    %21 = arith.subf %17, %20 : vector<4x1x128xf32>
    %22 = math.exp %21 : vector<4x1x128xf32>
    %cst_17 = arith.constant dense<0.000000e+00> : vector<4x1xf32>
    %23 = vector.multi_reduction <add>, %22, %cst_17 [2] : vector<4x1x128xf32> to vector<4x1xf32>
    %24 = vector.shape_cast %23 : vector<4x1xf32> to vector<4x1x1xf32>
    %25 = tpu.reciprocal %24 {approx = true} : vector<4x1x1xf32> -> vector<4x1x1xf32>
    %26 = vector.broadcast %25 : vector<4x1x1xf32> to vector<4x1x128xf32>
    %27 = arith.mulf %22, %26 : vector<4x1x128xf32>
    %c0_18 = arith.constant 0 : index
    %c0_19 = arith.constant 0 : index
    %c0_20 = arith.constant 0 : index
    %28 = vector.load %arg7[%c0_18, %c0_19, %c0_20] : memref<4x128x32xf32, #tpu.memory_space<vmem>>, vector<4x128x32xf32>
    "tpu.trace_start"() <{level = 10 : i32, message = "bnl,blm->bnm"}> : () -> ()
    %cst_21 = arith.constant dense<0.000000e+00> : vector<4x1x32xf32>
    %29 = tpu.matmul %27, %28, %cst_21 {dimension_numbers = #tpu.dot_dimension_numbers<[2], [1], [1], [2], [0, 0, 0, 1, 1, 2], [0], [0]>} : vector<4x1x128xf32>, vector<4x128x32xf32>, vector<4x1x32xf32> -> vector<4x1x32xf32>
    "tpu.trace_stop"() : () -> ()
    %c0_22 = arith.constant 0 : index
    %c0_23 = arith.constant 0 : index
    %c0_24 = arith.constant 0 : index
    %30 = vector.load %arg8[%c0_22, %c0_23, %c0_24] : memref<4x1x32xf32, #tpu.memory_space<vmem>>, vector<4x1x32xf32>
    tpu.vector_store %arg8[%c0_22, %c0_23, %c0_24], %29 {strides = array<i32>} : memref<4x1x32xf32, #tpu.memory_space<vmem>>, vector<4x1x32xf32>,
    %c0_25 = arith.constant 0 : index
    %c0_26 = arith.constant 0 : index
    %c0_27 = arith.constant 0 : index
    %31 = vector.load %arg9[%c0_25, %c0_26, %c0_27] : memref<4x1x128xf32, #tpu.memory_space<vmem>>, vector<4x1x128xf32>
    tpu.vector_store %arg9[%c0_25, %c0_26, %c0_27], %27 {strides = array<i32>} : memref<4x1x128xf32, #tpu.memory_space<vmem>>, vector<4x1x128xf32>,
    return
  }
  func.func @transform_0(%arg0: i32) -> (i32, i32, i32) {
    %c0_i32 = arith.constant 0 : i32
    %c0_i32_0 = arith.constant 0 : i32
    %c0_i32_1 = arith.constant 0 : i32
    return %arg0, %c0_i32, %c0_i32_0 : i32, i32, i32
  }
  func.func @transform_1(%arg0: i32) -> (i32, i32, i32) {
    %c0_i32 = arith.constant 0 : i32
    %c0_i32_0 = arith.constant 0 : i32
    %c0_i32_1 = arith.constant 0 : i32
    return %arg0, %c0_i32, %c0_i32_0 : i32, i32, i32
  }
  func.func @transform_2(%arg0: i32) -> (i32, i32, i32) {
    %c0_i32 = arith.constant 0 : i32
    %c0_i32_0 = arith.constant 0 : i32
    %c0_i32_1 = arith.constant 0 : i32
    return %arg0, %c0_i32, %c0_i32_0 : i32, i32, i32
  }
  func.func @transform_3(%arg0: i32) -> (i32, i32) {
    %c0_i32 = arith.constant 0 : i32
    %c0_i32_0 = arith.constant 0 : i32
    %c0_i32_1 = arith.constant 0 : i32
    return %c0_i32, %c0_i32_0 : i32, i32
  }
  func.func @transform_4(%arg0: i32) -> (i32, i32) {
    %c0_i32 = arith.constant 0 : i32
    %c0_i32_0 = arith.constant 0 : i32
    %c0_i32_1 = arith.constant 0 : i32
    return %c0_i32, %c0_i32_0 : i32, i32
  }
  func.func @transform_5(%arg0: i32) -> (i32, i32, i32) {
    %c0_i32 = arith.constant 0 : i32
    %c0_i32_0 = arith.constant 0 : i32
    %c0_i32_1 = arith.constant 0 : i32
    return %arg0, %c0_i32, %c0_i32_0 : i32, i32, i32
  }
  func.func @transform_6(%arg0: i32) -> (i32, i32, i32) {
    %c0_i32 = arith.constant 0 : i32
    %c0_i32_0 = arith.constant 0 : i32
    %c0_i32_1 = arith.constant 0 : i32
    return %arg0, %c0_i32, %c0_i32_0 : i32, i32, i32
  }
  func.func @transform_7(%arg0: i32) -> (i32, i32, i32) {
    %c0_i32 = arith.constant 0 : i32
    %c0_i32_0 = arith.constant 0 : i32
    %c0_i32_1 = arith.constant 0 : i32
    return %arg0, %c0_i32, %c0_i32_0 : i32, i32, i32
  }
  func.func @transform_8(%arg0: i32) -> (i32, i32, i32) {
    %c0_i32 = arith.constant 0 : i32
    %c0_i32_0 = arith.constant 0 : i32
    %c0_i32_1 = arith.constant 0 : i32
    return %arg0, %c0_i32, %c0_i32_0 : i32, i32, i32
  }
}

</mosaic_0001>

<llo_original>
// kernel: tpu_custom_call.1
$region0: #{tpu_custom_call.1}
  #allocation0 [shape = 'u32[]', space=smem, size = 0x4, offset = 0x4, fixed_abs, tag = 'smem constant byte address 0x4 - core index']
  #allocation1 [shape = 'u32[72,128]{1,0:T(1,128)}', space=vmem, size = 0x9000, scoped, tag = 'internal scratch']
  %s0 = inlined_call_operand.vmem [shape: f32[8,1,128], index: 0, kind: input, shape index: {}]
  %s1 = inlined_call_operand.vmem [shape: f32[8,128,128], index: 1, kind: input, shape index: {}]
  %s2 = inlined_call_operand.vmem [shape: f32[8,128,16], index: 2, kind: input, shape index: {}]
  %s3 = inlined_call_operand.vmem [shape: f32[16,128], index: 3, kind: input, shape index: {}]
  %s4 = inlined_call_operand.vmem [shape: f32[1,128], index: 4, kind: input, shape index: {}]
  %s5 = inlined_call_operand.vmem [shape: f32[8,1,128], index: 5, kind: input, shape index: {}]
  %s6 = inlined_call_operand.vmem [shape: f32[8,128,32], index: 6, kind: input, shape index: {}]
  %s7 = inlined_call_operand.hbm [shape: f32[8,1,32], index: 7, kind: output, shape index: {0}]
  %s8 = inlined_call_operand.hbm [shape: f32[8,1,128], index: 8, kind: output, shape index: {1}]
  %9 = xla_tuple %s7, %s8
  %s10 = sld [smem:[#allocation0]]
  $region69: #{tpu_custom_call.1} parent=0
    _
  %s12 = ssub.s32 1, %s10
  %s13 = scalar_select 0, %s12, %s10
  $region1: #{tpu_custom_call.1} parent=0
    #allocation2 [shape = 'u8[4096]{0}', space=vmem, size = 0x1000, scoped, tag = 'output window, operand 0']
    #allocation3 [shape = 's32[2]{0}', space=sflag, size = 0x8, scoped, tag = 'scoped memory for tpu_custom_call.1']
    #allocation4 [shape = 'u8[4096]{0}', space=vmem, size = 0x1000, scoped, tag = 'output window, operand 1']
    #allocation5 [shape = 's32[2]{0}', space=sflag, size = 0x8, scoped, tag = 'scoped memory for tpu_custom_call.1']
    %14 = vsyncpa [#allocation3], 0
    %s15 = scalar_lea.sflag [#allocation3], 1
    %16 = vsyncpa %s15, 0
    %17 = vsyncpa [#allocation5], 0
    %s18 = scalar_lea.sflag [#allocation5], 1
    %19 = vsyncpa %s18, 0
    loop: start=0, step=1, limit=4
    $region2: #{tpu_custom_call.1} parent=1 // loop_pre_header
      _
    $region3: #{tpu_custom_call.1} parent=1 // loop_header
      %s21 = sphi 0, %s25
      %p22 = scmp.ge.s32.totalorder %s21, 4
      %s31 = sphi 0, %s33
      %s34 = sphi 0, %s31
      %s35 = sphi 0, %s34
      %s51 = sphi 0, %s35
      %s57 = sphi 0, %s59
      %s60 = sphi 0, %s57
      %s61 = sphi 0, %s60
      %s77 = sphi 0, %s61
      %s83 = sphi 0, %s85
      %s86 = sphi 0, %s83
      %s87 = sphi 0, %s86
      %s103 = sphi 0, %s87
      %s107 = sphi 0, %s107
      %s109 = sphi 0, %s107
      %s110 = sphi 0, %s109
      %s124 = sphi 0, %s110
      %s128 = sphi 0, %s128
      %s130 = sphi 0, %s128
      %s131 = sphi 0, %s130
      %s145 = sphi 0, %s131
      %s151 = sphi 0, %s153
      %s154 = sphi 0, %s151
      %s155 = sphi 0, %s154
      %s171 = sphi 0, %s155
      %s177 = sphi 0, %s179
      %s180 = sphi 0, %s177
      %s181 = sphi 0, %s180
      %s197 = sphi 0, %s181
      %s203 = sphi 0, %s205
      %s206 = sphi 0, %s203
      %s207 = sphi 0, %s206
      %s223 = sphi 0, %s207
      %s229 = sphi 0, %s231
      %s232 = sphi 0, %s229
      %s233 = sphi 0, %s232
      %s249 = sphi 0, %s233
    $region4: #{tpu_custom_call.1} parent=1 // loop_header_branch
      %24 = sbr.rel (%p22) target = $region8
    $region5: #{tpu_custom_call.1} parent=1 // loop_body
      %s26 = ssub.s32 %s21, 1
      %s27 = ssub.s32 %s21, 2
      %s28 = sadd.s32 %s21, 1
      %s29 = ssub.s32 %s21, %s28
      %p30 = scmp.eq.s32.totalorder %s29, 0
      %s32 = sadd.s32 %s31, 1
      %s33 = scalar_select %p30, %s31, %s32
      %p36 = pneg %p30
      %p37 = scmp.eq.s32.totalorder %s21, 1
      %p38 = por %p36, %p37
      %p39 = scmp.ne.s32.totalorder %s31, %s34
      %p40 = scmp.eq.s32.totalorder %s21, 0
      %p41 = por %p39, %p40
      %p42 = scmp.ne.s32.totalorder %s31, %s34
      %p43 = scmp.eq.s32.totalorder %s26, 1
      %p44 = por %p42, %p43
      %p45 = scmp.ne.s32.totalorder %s34, %s35
      %p46 = scmp.eq.s32.totalorder %s26, 0
      %p47 = por %p45, %p46
      %p48 = scmp.ne.s32.totalorder %s34, %s35
      %p49 = scmp.eq.s32.totalorder %s27, 1
      %p50 = por %p48, %p49
      %p52 = scmp.ne.s32.totalorder %s35, %s51
      %p53 = scmp.eq.s32.totalorder %s27, 0
      %p54 = por %p52, %p53
      %s55 = ssub.s32 %s21, %s28
      %p56 = scmp.eq.s32.totalorder %s55, 0
      %s58 = sadd.s32 %s57, 1
      %s59 = scalar_select %p56, %s57, %s58
      %p62 = pneg %p56
      %p63 = scmp.eq.s32.totalorder %s21, 1
      %p64 = por %p62, %p63
      %p65 = scmp.ne.s32.totalorder %s57, %s60
      %p66 = scmp.eq.s32.totalorder %s21, 0
      %p67 = por %p65, %p66
      %p68 = scmp.ne.s32.totalorder %s57, %s60
      %p69 = scmp.eq.s32.totalorder %s26, 1
      %p70 = por %p68, %p69
      %p71 = scmp.ne.s32.totalorder %s60, %s61
      %p72 = scmp.eq.s32.totalorder %s26, 0
      %p73 = por %p71, %p72
      %p74 = scmp.ne.s32.totalorder %s60, %s61
      %p75 = scmp.eq.s32.totalorder %s27, 1
      %p76 = por %p74, %p75
      %p78 = scmp.ne.s32.totalorder %s61, %s77
      %p79 = scmp.eq.s32.totalorder %s27, 0
      %p80 = por %p78, %p79
      %s81 = ssub.s32 %s21, %s28
      %p82 = scmp.eq.s32.totalorder %s81, 0
      %s84 = sadd.s32 %s83, 1
      %s85 = scalar_select %p82, %s83, %s84
      %p88 = pneg %p82
      %p89 = scmp.eq.s32.totalorder %s21, 1
      %p90 = por %p88, %p89
      %p91 = scmp.ne.s32.totalorder %s83, %s86
      %p92 = scmp.eq.s32.totalorder %s21, 0
      %p93 = por %p91, %p92
      %p94 = scmp.ne.s32.totalorder %s83, %s86
      %p95 = scmp.eq.s32.totalorder %s26, 1
      %p96 = por %p94, %p95
      %p97 = scmp.ne.s32.totalorder %s86, %s87
      %p98 = scmp.eq.s32.totalorder %s26, 0
      %p99 = por %p97, %p98
      %p100 = scmp.ne.s32.totalorder %s86, %s87
      %p101 = scmp.eq.s32.totalorder %s27, 1
      %p102 = por %p100, %p101
      %p104 = scmp.ne.s32.totalorder %s87, %s103
      %p105 = scmp.eq.s32.totalorder %s27, 0
      %p106 = por %p104, %p105
      %s108 = sadd.s32 %s107, 1
      %p111 = scmp.eq.s32.totalorder %s21, 1
      %p112 = scmp.ne.s32.totalorder %s107, %s109
      %p113 = scmp.eq.s32.totalorder %s21, 0
      %p114 = por %p112, %p113
      %p115 = scmp.ne.s32.totalorder %s107, %s109
      %p116 = scmp.eq.s32.totalorder %s26, 1
      %p117 = por %p115, %p116
      %p118 = scmp.ne.s32.totalorder %s109, %s110
      %p119 = scmp.eq.s32.totalorder %s26, 0
      %p120 = por %p118, %p119
      %p121 = scmp.ne.s32.totalorder %s109, %s110
      %p122 = scmp.eq.s32.totalorder %s27, 1
      %p123 = por %p121, %p122
      %p125 = scmp.ne.s32.totalorder %s110, %s124
      %p126 = scmp.eq.s32.totalorder %s27, 0
      %p127 = por %p125, %p126
      %s129 = sadd.s32 %s128, 1
      %p132 = scmp.eq.s32.totalorder %s21, 1
      %p133 = scmp.ne.s32.totalorder %s128, %s130
      %p134 = scmp.eq.s32.totalorder %s21, 0
      %p135 = por %p133, %p134
      %p136 = scmp.ne.s32.totalorder %s128, %s130
      %p137 = scmp.eq.s32.totalorder %s26, 1
      %p138 = por %p136, %p137
      %p139 = scmp.ne.s32.totalorder %s130, %s131
      %p140 = scmp.eq.s32.totalorder %s26, 0
      %p141 = por %p139, %p140
      %p142 = scmp.ne.s32.totalorder %s130, %s131
      %p143 = scmp.eq.s32.totalorder %s27, 1
      %p144 = por %p142, %p143
      %p146 = scmp.ne.s32.totalorder %s131, %s145
      %p147 = scmp.eq.s32.totalorder %s27, 0
      %p148 = por %p146, %p147
      %s149 = ssub.s32 %s21, %s28
      %p150 = scmp.eq.s32.totalorder %s149, 0
      %s152 = sadd.s32 %s151, 1
      %s153 = scalar_select %p150, %s151, %s152
      %p156 = pneg %p150
      %p157 = scmp.eq.s32.totalorder %s21, 1
      %p158 = por %p156, %p157
      %p159 = scmp.ne.s32.totalorder %s151, %s154
      %p160 = scmp.eq.s32.totalorder %s21, 0
      %p161 = por %p159, %p160
      %p162 = scmp.ne.s32.totalorder %s151, %s154
      %p163 = scmp.eq.s32.totalorder %s26, 1
      %p164 = por %p162, %p163
      %p165 = scmp.ne.s32.totalorder %s154, %s155
      %p166 = scmp.eq.s32.totalorder %s26, 0
      %p167 = por %p165, %p166
      %p168 = scmp.ne.s32.totalorder %s154, %s155
      %p169 = scmp.eq.s32.totalorder %s27, 1
      %p170 = por %p168, %p169
      %p172 = scmp.ne.s32.totalorder %s155, %s171
      %p173 = scmp.eq.s32.totalorder %s27, 0
      %p174 = por %p172, %p173
      %s175 = ssub.s32 %s21, %s28
      %p176 = scmp.eq.s32.totalorder %s175, 0
      %s178 = sadd.s32 %s177, 1
      %s179 = scalar_select %p176, %s177, %s178
      %p182 = pneg %p176
      %p183 = scmp.eq.s32.totalorder %s21, 1
      %p184 = por %p182, %p183
      %p185 = scmp.ne.s32.totalorder %s177, %s180
      %p186 = scmp.eq.s32.totalorder %s21, 0
      %p187 = por %p185, %p186
      %p188 = scmp.ne.s32.totalorder %s177, %s180
      %p189 = scmp.eq.s32.totalorder %s26, 1
      %p190 = por %p188, %p189
      %p191 = scmp.ne.s32.totalorder %s180, %s181
      %p192 = scmp.eq.s32.totalorder %s26, 0
      %p193 = por %p191, %p192
      %p194 = scmp.ne.s32.totalorder %s180, %s181
      %p195 = scmp.eq.s32.totalorder %s27, 1
      %p196 = por %p194, %p195
      %p198 = scmp.ne.s32.totalorder %s181, %s197
      %p199 = scmp.eq.s32.totalorder %s27, 0
      %p200 = por %p198, %p199
      %s201 = ssub.s32 %s21, %s28
      %p202 = scmp.eq.s32.totalorder %s201, 0
      %s204 = sadd.s32 %s203, 1
      %s205 = scalar_select %p202, %s203, %s204
      %p208 = pneg %p202
      %p209 = scmp.eq.s32.totalorder %s21, 1
      %p210 = por %p208, %p209
      %p211 = scmp.ne.s32.totalorder %s203, %s206
      %p212 = scmp.eq.s32.totalorder %s21, 0
      %p213 = por %p211, %p212
      %p214 = scmp.ne.s32.totalorder %s203, %s206
      %p215 = scmp.eq.s32.totalorder %s26, 1
      %p216 = por %p214, %p215
      %p217 = scmp.ne.s32.totalorder %s206, %s207
      %p218 = scmp.eq.s32.totalorder %s26, 0
      %p219 = por %p217, %p218
      %p220 = scmp.ne.s32.totalorder %s206, %s207
      %p221 = scmp.eq.s32.totalorder %s27, 1
      %p222 = por %p220, %p221
      %p224 = scmp.ne.s32.totalorder %s207, %s223
      %p225 = scmp.eq.s32.totalorder %s27, 0
      %p226 = por %p224, %p225
      %s227 = ssub.s32 %s21, %s28
      %p228 = scmp.eq.s32.totalorder %s227, 0
      %s230 = sadd.s32 %s229, 1
      %s231 = scalar_select %p228, %s229, %s230
      %p234 = pneg %p228
      %p235 = scmp.eq.s32.totalorder %s21, 1
      %p236 = por %p234, %p235
      %p237 = scmp.ne.s32.totalorder %s229, %s232
      %p238 = scmp.eq.s32.totalorder %s21, 0
      %p239 = por %p237, %p238
      %p240 = scmp.ne.s32.totalorder %s229, %s232
      %p241 = scmp.eq.s32.totalorder %s26, 1
      %p242 = por %p240, %p241
      %p243 = scmp.ne.s32.totalorder %s232, %s233
      %p244 = scmp.eq.s32.totalorder %s26, 0
      %p245 = por %p243, %p244
      %p246 = scmp.ne.s32.totalorder %s232, %s233
      %p247 = scmp.eq.s32.totalorder %s27, 1
      %p248 = por %p246, %p247
      %p250 = scmp.ne.s32.totalorder %s233, %s249
      %p251 = scmp.eq.s32.totalorder %s27, 0
      %p252 = por %p250, %p251
      %p253 = scmp.le.s32.totalorder 1, %s21
      %p254 = scmp.lt.s32.totalorder %s21, 3
      %p255 = pnand %p253, %p254
      %p256 = pneg %p255
      // Predicated region
      $region9: #{tpu_custom_call.1} parent=5 // pred_check
        _
      $region10: #{tpu_custom_call.1} parent=5 // pred_check_branch
        %258 = sbr.rel (%p255) target = $region12
      $region11: #{tpu_custom_call.1} parent=5 // pred_region
        %s259 = ssub.s32 %s21, 1
        // Predicated region
        $region13: #{tpu_custom_call.1} parent=11 // pred_check
          %p260 = pneg %p120
        $region14: #{tpu_custom_call.1} parent=11 // pred_check_branch
          %262 = sbr.rel (%p260) target = $region16
        $region15: #{tpu_custom_call.1} parent=11 // pred_region
          _
        $region16: #{tpu_custom_call.1} parent=11 // pred_fallthru
          _
        // Predicated region
        $region17: #{tpu_custom_call.1} parent=11 // pred_check
          %p263 = pneg %p141
        $region18: #{tpu_custom_call.1} parent=11 // pred_check_branch
          %265 = sbr.rel (%p263) target = $region20
        $region19: #{tpu_custom_call.1} parent=11 // pred_region
          _
        $region20: #{tpu_custom_call.1} parent=11 // pred_fallthru
          _
      $region12: #{tpu_custom_call.1} parent=5 // pred_fallthru
        _
      %p266 = scmp.lt.s32.totalorder %s21, 2
      // Predicated region
      $region21: #{tpu_custom_call.1} parent=5 // pred_check
        %p267 = pneg %p266
      $region22: #{tpu_custom_call.1} parent=5 // pred_check_branch
        %269 = sbr.rel (%p267) target = $region24
      $region23: #{tpu_custom_call.1} parent=5 // pred_region
        // Predicated region
        $region25: #{tpu_custom_call.1} parent=23 // pred_check
          %p270 = pneg %p41
        $region26: #{tpu_custom_call.1} parent=23 // pred_check_branch
          %272 = sbr.rel (%p270) target = $region28
        $region27: #{tpu_custom_call.1} parent=23 // pred_region
          %s273 = smul.u32 4, %s21
          %p274 = scmp.lt.s32.totalorder %s273, 7
          %s275 = scalar_select %p274, %s273, 7
          %s276 = scalar_lea.vmem %s0, %s275
          %s277 = smul.u32 4, %s21
        $region28: #{tpu_custom_call.1} parent=23 // pred_fallthru
          _
        // Predicated region
        $region29: #{tpu_custom_call.1} parent=23 // pred_check
          %p278 = pneg %p67
        $region30: #{tpu_custom_call.1} parent=23 // pred_check_branch
          %280 = sbr.rel (%p278) target = $region32
        $region31: #{tpu_custom_call.1} parent=23 // pred_region
          %s281 = smul.u32 4, %s21
          %p282 = scmp.lt.s32.totalorder %s281, 7
          %s283 = scalar_select %p282, %s281, 7
          %s284 = smul.addr %s283, 16
          %s285 = smul.addr %s284, 8
          %s286 = scalar_lea.vmem %s1, %s285
          %s287 = smul.u32 4, %s21
        $region32: #{tpu_custom_call.1} parent=23 // pred_fallthru
          _
        // Predicated region
        $region33: #{tpu_custom_call.1} parent=23 // pred_check
          %p288 = pneg %p93
        $region34: #{tpu_custom_call.1} parent=23 // pred_check_branch
          %290 = sbr.rel (%p288) target = $region36
        $region35: #{tpu_custom_call.1} parent=23 // pred_region
          %s291 = smul.u32 4, %s21
          %p292 = scmp.lt.s32.totalorder %s291, 7
          %s293 = scalar_select %p292, %s291, 7
          %s294 = smul.addr %s293, 16
          %s295 = smul.addr %s294, 8
          %s296 = scalar_lea.vmem %s2, %s295
          %s297 = smul.u32 4, %s21
        $region36: #{tpu_custom_call.1} parent=23 // pred_fallthru
          _
        // Predicated region
        $region37: #{tpu_custom_call.1} parent=23 // pred_check
          %p298 = pneg %p161
        $region38: #{tpu_custom_call.1} parent=23 // pred_check_branch
          %300 = sbr.rel (%p298) target = $region40
        $region39: #{tpu_custom_call.1} parent=23 // pred_region
          %s301 = smul.u32 4, %s21
          %p302 = scmp.lt.s32.totalorder %s301, 7
          %s303 = scalar_select %p302, %s301, 7
          %s304 = scalar_lea.vmem %s5, %s303
          %s305 = smul.u32 4, %s21
        $region40: #{tpu_custom_call.1} parent=23 // pred_fallthru
          _
        // Predicated region
        $region41: #{tpu_custom_call.1} parent=23 // pred_check
          %p306 = pneg %p187
        $region42: #{tpu_custom_call.1} parent=23 // pred_check_branch
          %308 = sbr.rel (%p306) target = $region44
        $region43: #{tpu_custom_call.1} parent=23 // pred_region
          %s309 = smul.u32 4, %s21
          %p310 = scmp.lt.s32.totalorder %s309, 7
          %s311 = scalar_select %p310, %s309, 7
          %s312 = smul.addr %s311, 16
          %s313 = smul.addr %s312, 8
          %s314 = scalar_lea.vmem %s6, %s313
          %s315 = smul.u32 4, %s21
        $region44: #{tpu_custom_call.1} parent=23 // pred_fallthru
          _
      $region24: #{tpu_custom_call.1} parent=5 // pred_fallthru
        _
      %p316 = scmp.le.s32.totalorder 1, %s21
      %p317 = scmp.lt.s32.totalorder %s21, 3
      %p318 = pnand %p316, %p317
      %p319 = pneg %p318
      // Predicated region
      $region45: #{tpu_custom_call.1} parent=5 // pred_check
        _
      $region46: #{tpu_custom_call.1} parent=5 // pred_check_branch
        %321 = sbr.rel (%p318) target = $region48
      $region47: #{tpu_custom_call.1} parent=5 // pred_region
        %s322 = ssub.s32 %s21, 1
        %s323 = smul.u32 4, %s26
        %p324 = scmp.lt.s32.totalorder %s323, 7
        %s325 = scalar_select %p324, %s323, 7
        %s326 = scalar_lea.vmem %s0, %s325
        %p327 = pneg %p47
        %p328 = pneg %p44
        %s329 = smul.u32 4, %s26
        %p330 = scmp.lt.s32.totalorder %s329, 7
        %s331 = scalar_select %p330, %s329, 7
        %s332 = smul.addr %s331, 16
        %s333 = smul.addr %s332, 8
        %s334 = scalar_lea.vmem %s1, %s333
        %p335 = pneg %p73
        %p336 = pneg %p70
        %s337 = smul.u32 4, %s26
        %p338 = scmp.lt.s32.totalorder %s337, 7
        %s339 = scalar_select %p338, %s337, 7
        %s340 = smul.addr %s339, 16
        %s341 = smul.addr %s340, 8
        %s342 = scalar_lea.vmem %s2, %s341
        %p343 = pneg %p99
        %p344 = pneg %p96
        %p345 = pneg %p120
        %p346 = pneg %p117
        %p347 = pneg %p141
        %p348 = pneg %p138
        %s349 = smul.u32 4, %s26
        %p350 = scmp.lt.s32.totalorder %s349, 7
        %s351 = scalar_select %p350, %s349, 7
        %s352 = scalar_lea.vmem %s5, %s351
        %p353 = pneg %p167
        %p354 = pneg %p164
        %s355 = smul.u32 4, %s26
        %p356 = scmp.lt.s32.totalorder %s355, 7
        %s357 = scalar_select %p356, %s355, 7
        %s358 = smul.addr %s357, 16
        %s359 = smul.addr %s358, 8
        %s360 = scalar_lea.vmem %s6, %s359
        %p361 = pneg %p193
        %p362 = pneg %p190
        %p363 = pneg %p219
        %p364 = pneg %p216
        %s365 = sand.u32 %s206, 1
        %s366 = scalar_lea.sflag [#allocation3], %s365
        %s367 = sand.u32 %s206, 1
        %s368 = smul.addr %s367, 4
        %s369 = scalar_lea.vmem [#allocation2], %s368
        %p370 = pneg %p245
        %p371 = pneg %p242
        %s372 = sand.u32 %s232, 1
        %s373 = scalar_lea.sflag [#allocation5], %s372
        %s374 = sand.u32 %s232, 1
        %s375 = smul.addr %s374, 4
        %s376 = scalar_lea.vmem [#allocation4], %s375
        %s377 = smul.u32 4, %s26
        %p378 = scmp.lt.s32.totalorder %s377, 7
        %s379 = scalar_select %p378, %s377, 7
        %s380 = scalar_lea.vmem %s0, %s379
        %s381 = smul.u32 4, %s26
        %s382 = smul.u32 4, %s26
        %p383 = scmp.lt.s32.totalorder %s382, 7
        %s384 = scalar_select %p383, %s382, 7
        %s385 = smul.addr %s384, 16
        %s386 = smul.addr %s385, 8
        %s387 = scalar_lea.vmem %s1, %s386
        %s388 = smul.u32 4, %s26
        %s389 = smul.u32 4, %s26
        %p390 = scmp.lt.s32.totalorder %s389, 7
        %s391 = scalar_select %p390, %s389, 7
        %s392 = smul.addr %s391, 16
        %s393 = smul.addr %s392, 8
        %s394 = scalar_lea.vmem %s2, %s393
        %s395 = smul.u32 4, %s26
        %s396 = smul.u32 4, %s26
        %p397 = scmp.lt.s32.totalorder %s396, 7
        %s398 = scalar_select %p397, %s396, 7
        %s399 = scalar_lea.vmem %s5, %s398
        %s400 = smul.u32 4, %s26
        %s401 = smul.u32 4, %s26
        %p402 = scmp.lt.s32.totalorder %s401, 7
        %s403 = scalar_select %p402, %s401, 7
        %s404 = smul.addr %s403, 16
        %s405 = smul.addr %s404, 8
        %s406 = scalar_lea.vmem %s6, %s405
        %s407 = smul.u32 4, %s26
        %s408 = smul.u32 4, %s26
        %s409 = smul.u32 4, %s26
        %v410 = vld [vmem:[%s394] sm:$0xff]
        %v411 = vld [vmem:[%s394 + $0x8] sm:$0xff]
        %v412 = vld [vmem:[%s394 + $0x10] sm:$0xff]
        %v413 = vld [vmem:[%s394 + $0x18] sm:$0xff]
        %v414 = vld [vmem:[%s394 + $0x20] sm:$0xff]
        %v415 = vld [vmem:[%s394 + $0x28] sm:$0xff]
        %v416 = vld [vmem:[%s394 + $0x30] sm:$0xff]
        %v417 = vld [vmem:[%s394 + $0x38] sm:$0xff]
        %v418 = vld [vmem:[%s394 + $0x40] sm:$0xff]
        %v419 = vld [vmem:[%s394 + $0x48] sm:$0xff]
        %v420 = vld [vmem:[%s394 + $0x50] sm:$0xff]
        %v421 = vld [vmem:[%s394 + $0x58] sm:$0xff]
        %v422 = vld [vmem:[%s394 + $0x60] sm:$0xff]
        %v423 = vld [vmem:[%s394 + $0x68] sm:$0xff]
        %v424 = vld [vmem:[%s394 + $0x70] sm:$0xff]
        %v425 = vld [vmem:[%s394 + $0x78] sm:$0xff]
        %v426 = vld [vmem:[%s394 + $0x80] sm:$0xff]
        %v427 = vld [vmem:[%s394 + $0x88] sm:$0xff]
        %v428 = vld [vmem:[%s394 + $0x90] sm:$0xff]
        %v429 = vld [vmem:[%s394 + $0x98] sm:$0xff]
        %v430 = vld [vmem:[%s394 + $0xa0] sm:$0xff]
        %v431 = vld [vmem:[%s394 + $0xa8] sm:$0xff]
        %v432 = vld [vmem:[%s394 + $0xb0] sm:$0xff]
        %v433 = vld [vmem:[%s394 + $0xb8] sm:$0xff]
        %v434 = vld [vmem:[%s394 + $0xc0] sm:$0xff]
        %v435 = vld [vmem:[%s394 + $0xc8] sm:$0xff]
        %v436 = vld [vmem:[%s394 + $0xd0] sm:$0xff]
        %v437 = vld [vmem:[%s394 + $0xd8] sm:$0xff]
        %v438 = vld [vmem:[%s394 + $0xe0] sm:$0xff]
        %v439 = vld [vmem:[%s394 + $0xe8] sm:$0xff]
        %v440 = vld [vmem:[%s394 + $0xf0] sm:$0xff]
        %v441 = vld [vmem:[%s394 + $0xf8] sm:$0xff]
        %v442 = vld [vmem:[%s394 + $0x100] sm:$0xff]
        %v443 = vld [vmem:[%s394 + $0x108] sm:$0xff]
        %v444 = vld [vmem:[%s394 + $0x110] sm:$0xff]
        %v445 = vld [vmem:[%s394 + $0x118] sm:$0xff]
        %v446 = vld [vmem:[%s394 + $0x120] sm:$0xff]
        %v447 = vld [vmem:[%s394 + $0x128] sm:$0xff]
        %v448 = vld [vmem:[%s394 + $0x130] sm:$0xff]
        %v449 = vld [vmem:[%s394 + $0x138] sm:$0xff]
        %v450 = vld [vmem:[%s394 + $0x140] sm:$0xff]
        %v451 = vld [vmem:[%s394 + $0x148] sm:$0xff]
        %v452 = vld [vmem:[%s394 + $0x150] sm:$0xff]
        %v453 = vld [vmem:[%s394 + $0x158] sm:$0xff]
        %v454 = vld [vmem:[%s394 + $0x160] sm:$0xff]
        %v455 = vld [vmem:[%s394 + $0x168] sm:$0xff]
        %v456 = vld [vmem:[%s394 + $0x170] sm:$0xff]
        %v457 = vld [vmem:[%s394 + $0x178] sm:$0xff]
        %v458 = vld [vmem:[%s394 + $0x180] sm:$0xff]
        %v459 = vld [vmem:[%s394 + $0x188] sm:$0xff]
        %v460 = vld [vmem:[%s394 + $0x190] sm:$0xff]
        %v461 = vld [vmem:[%s394 + $0x198] sm:$0xff]
        %v462 = vld [vmem:[%s394 + $0x1a0] sm:$0xff]
        %v463 = vld [vmem:[%s394 + $0x1a8] sm:$0xff]
        %v464 = vld [vmem:[%s394 + $0x1b0] sm:$0xff]
        %v465 = vld [vmem:[%s394 + $0x1b8] sm:$0xff]
        %v466 = vld [vmem:[%s394 + $0x1c0] sm:$0xff]
        %v467 = vld [vmem:[%s394 + $0x1c8] sm:$0xff]
        %v468 = vld [vmem:[%s394 + $0x1d0] sm:$0xff]
        %v469 = vld [vmem:[%s394 + $0x1d8] sm:$0xff]
        %v470 = vld [vmem:[%s394 + $0x1e0] sm:$0xff]
        %v471 = vld [vmem:[%s394 + $0x1e8] sm:$0xff]
        %v472 = vld [vmem:[%s394 + $0x1f0] sm:$0xff]
        %v473 = vld [vmem:[%s394 + $0x1f8] sm:$0xff]
        %v474 = vld [vmem:[%s3] sm:$0xff]
        %v475 = vld [vmem:[%s3 + $0x8] sm:$0xff]
        %vm476 = vcmask 130048
        %v478 = vsel %vm476, %v410, 0
        %v481 = vsel %vm476, %v411, 0
        %v484 = vsel %vm476, %v412, 0
        %v487 = vsel %vm476, %v413, 0
        %v490 = vsel %vm476, %v414, 0
        %v493 = vsel %vm476, %v415, 0
        %v496 = vsel %vm476, %v416, 0
        %v499 = vsel %vm476, %v417, 0
        %v502 = vsel %vm476, %v418, 0
        %v505 = vsel %vm476, %v419, 0
        %v508 = vsel %vm476, %v420, 0
        %v511 = vsel %vm476, %v421, 0
        %v514 = vsel %vm476, %v422, 0
        %v517 = vsel %vm476, %v423, 0
        %v520 = vsel %vm476, %v424, 0
        %v523 = vsel %vm476, %v425, 0
        %v526 = vsel %vm476, %v426, 0
        %v529 = vsel %vm476, %v427, 0
        %v532 = vsel %vm476, %v428, 0
        %v535 = vsel %vm476, %v429, 0
        %v538 = vsel %vm476, %v430, 0
        %v541 = vsel %vm476, %v431, 0
        %v544 = vsel %vm476, %v432, 0
        %v547 = vsel %vm476, %v433, 0
        %v550 = vsel %vm476, %v434, 0
        %v553 = vsel %vm476, %v435, 0
        %v556 = vsel %vm476, %v436, 0
        %v559 = vsel %vm476, %v437, 0
        %v562 = vsel %vm476, %v438, 0
        %v565 = vsel %vm476, %v439, 0
        %v568 = vsel %vm476, %v440, 0
        %v571 = vsel %vm476, %v441, 0
        %v574 = vsel %vm476, %v442, 0
        %v577 = vsel %vm476, %v443, 0
        %v580 = vsel %vm476, %v444, 0
        %v583 = vsel %vm476, %v445, 0
        %v586 = vsel %vm476, %v446, 0
        %v589 = vsel %vm476, %v447, 0
        %v592 = vsel %vm476, %v448, 0
        %v595 = vsel %vm476, %v449, 0
        %v598 = vsel %vm476, %v450, 0
        %v601 = vsel %vm476, %v451, 0
        %v604 = vsel %vm476, %v452, 0
        %v607 = vsel %vm476, %v453, 0
        %v610 = vsel %vm476, %v454, 0
        %v613 = vsel %vm476, %v455, 0
        %v616 = vsel %vm476, %v456, 0
        %v619 = vsel %vm476, %v457, 0
        %v622 = vsel %vm476, %v458, 0
        %v625 = vsel %vm476, %v459, 0
        %v628 = vsel %vm476, %v460, 0
        %v631 = vsel %vm476, %v461, 0
        %v634 = vsel %vm476, %v462, 0
        %v637 = vsel %vm476, %v463, 0
        %v640 = vsel %vm476, %v464, 0
        %v643 = vsel %vm476, %v465, 0
        %v646 = vsel %vm476, %v466, 0
        %v649 = vsel %vm476, %v467, 0
        %v652 = vsel %vm476, %v468, 0
        %v655 = vsel %vm476, %v469, 0
        %v658 = vsel %vm476, %v470, 0
        %v661 = vsel %vm476, %v471, 0
        %v664 = vsel %vm476, %v472, 0
        %v667 = vsel %vm476, %v473, 0
        %669 = vmatpush.msra.mxu0 0.0
        %670 = vmatpush.msra.mxu0 0.0
        %671 = vmatpush.msra.mxu0 0.0
        %672 = vmatpush.msra.mxu0 0.0
        %673 = vmatpush.msra.mxu0 0.0
        %674 = vmatpush.msra.mxu0 0.0
        %675 = vmatpush.msra.mxu0 0.0
        %676 = vmatpush.msra.mxu0 0.0
        %677 = vmatpush.msra.mxu0 0.0
        %678 = vmatpush.msra.mxu0 0.0
        %679 = vmatpush.msra.mxu0 0.0
        %680 = vmatpush.msra.mxu0 0.0
        %681 = vmatpush.msra.mxu0 0.0
        %682 = vmatpush.msra.mxu0 0.0
        %683 = vmatpush.msra.mxu0 %v475
        %684 = vmatpush.msra.mxu0 %v474
        %685 = vmatmul.f32.gmra.mxu0 %v478
        %v686 = vpop.f32.mrf.mxu0
        %v687 = vadd.f32 0.0, %v686
        %688 = vmatmul.f32.gmra.mxu0 %v481
        %v689 = vpop.f32.mrf.mxu0
        %v690 = vadd.f32 0.0, %v689
        %691 = vmatmul.f32.gmra.mxu0 %v484
        %v692 = vpop.f32.mrf.mxu0
        %v693 = vadd.f32 0.0, %v692
        %694 = vmatmul.f32.gmra.mxu0 %v487
        %v695 = vpop.f32.mrf.mxu0
        %v696 = vadd.f32 0.0, %v695
        %697 = vmatmul.f32.gmra.mxu0 %v490
        %v698 = vpop.f32.mrf.mxu0
        %v699 = vadd.f32 0.0, %v698
        %700 = vmatmul.f32.gmra.mxu0 %v493
        %v701 = vpop.f32.mrf.mxu0
        %v702 = vadd.f32 0.0, %v701
        %703 = vmatmul.f32.gmra.mxu0 %v496
        %v704 = vpop.f32.mrf.mxu0
        %v705 = vadd.f32 0.0, %v704
        %706 = vmatmul.f32.gmra.mxu0 %v499
        %v707 = vpop.f32.mrf.mxu0
        %v708 = vadd.f32 0.0, %v707
        %709 = vmatmul.f32.gmra.mxu0 %v502
        %v710 = vpop.f32.mrf.mxu0
        %v711 = vadd.f32 0.0, %v710
        %712 = vmatmul.f32.gmra.mxu0 %v505
        %v713 = vpop.f32.mrf.mxu0
        %v714 = vadd.f32 0.0, %v713
        %715 = vmatmul.f32.gmra.mxu0 %v508
        %v716 = vpop.f32.mrf.mxu0
        %v717 = vadd.f32 0.0, %v716
        %718 = vmatmul.f32.gmra.mxu0 %v511
        %v719 = vpop.f32.mrf.mxu0
        %v720 = vadd.f32 0.0, %v719
        %721 = vmatmul.f32.gmra.mxu0 %v514
        %v722 = vpop.f32.mrf.mxu0
        %v723 = vadd.f32 0.0, %v722
        %724 = vmatmul.f32.gmra.mxu0 %v517
        %v725 = vpop.f32.mrf.mxu0
        %v726 = vadd.f32 0.0, %v725
        %727 = vmatmul.f32.gmra.mxu0 %v520
        %v728 = vpop.f32.mrf.mxu0
        %v729 = vadd.f32 0.0, %v728
        %730 = vmatmul.f32.gmra.mxu0 %v523
        %v731 = vpop.f32.mrf.mxu0
        %v732 = vadd.f32 0.0, %v731
        %733 = vmatmul.f32.gmra.mxu0 %v526
        %v734 = vpop.f32.mrf.mxu0
        %v735 = vadd.f32 0.0, %v734
        %736 = vmatmul.f32.gmra.mxu0 %v529
        %v737 = vpop.f32.mrf.mxu0
        %v738 = vadd.f32 0.0, %v737
        %739 = vmatmul.f32.gmra.mxu0 %v532
        %v740 = vpop.f32.mrf.mxu0
        %v741 = vadd.f32 0.0, %v740
        %742 = vmatmul.f32.gmra.mxu0 %v535
        %v743 = vpop.f32.mrf.mxu0
        %v744 = vadd.f32 0.0, %v743
        %745 = vmatmul.f32.gmra.mxu0 %v538
        %v746 = vpop.f32.mrf.mxu0
        %v747 = vadd.f32 0.0, %v746
        %748 = vmatmul.f32.gmra.mxu0 %v541
        %v749 = vpop.f32.mrf.mxu0
        %v750 = vadd.f32 0.0, %v749
        %751 = vmatmul.f32.gmra.mxu0 %v544
        %v752 = vpop.f32.mrf.mxu0
        %v753 = vadd.f32 0.0, %v752
        %754 = vmatmul.f32.gmra.mxu0 %v547
        %v755 = vpop.f32.mrf.mxu0
        %v756 = vadd.f32 0.0, %v755
        %757 = vmatmul.f32.gmra.mxu0 %v550
        %v758 = vpop.f32.mrf.mxu0
        %v759 = vadd.f32 0.0, %v758
        %760 = vmatmul.f32.gmra.mxu0 %v553
        %v761 = vpop.f32.mrf.mxu0
        %v762 = vadd.f32 0.0, %v761
        %763 = vmatmul.f32.gmra.mxu0 %v556
        %v764 = vpop.f32.mrf.mxu0
        %v765 = vadd.f32 0.0, %v764
        %766 = vmatmul.f32.gmra.mxu0 %v559
        %v767 = vpop.f32.mrf.mxu0
        %v768 = vadd.f32 0.0, %v767
        %769 = vmatmul.f32.gmra.mxu0 %v562
        %v770 = vpop.f32.mrf.mxu0
        %v771 = vadd.f32 0.0, %v770
        %772 = vmatmul.f32.gmra.mxu0 %v565
        %v773 = vpop.f32.mrf.mxu0
        %v774 = vadd.f32 0.0, %v773
        %775 = vmatmul.f32.gmra.mxu0 %v568
        %v776 = vpop.f32.mrf.mxu0
        %v777 = vadd.f32 0.0, %v776
        %778 = vmatmul.f32.gmra.mxu0 %v571
        %v779 = vpop.f32.mrf.mxu0
        %v780 = vadd.f32 0.0, %v779
        %781 = vmatmul.f32.gmra.mxu0 %v574
        %v782 = vpop.f32.mrf.mxu0
        %v783 = vadd.f32 0.0, %v782
        %784 = vmatmul.f32.gmra.mxu0 %v577
        %v785 = vpop.f32.mrf.mxu0
        %v786 = vadd.f32 0.0, %v785
        %787 = vmatmul.f32.gmra.mxu0 %v580
        %v788 = vpop.f32.mrf.mxu0
        %v789 = vadd.f32 0.0, %v788
        %790 = vmatmul.f32.gmra.mxu0 %v583
        %v791 = vpop.f32.mrf.mxu0
        %v792 = vadd.f32 0.0, %v791
        %793 = vmatmul.f32.gmra.mxu0 %v586
        %v794 = vpop.f32.mrf.mxu0
        %v795 = vadd.f32 0.0, %v794
        %796 = vmatmul.f32.gmra.mxu0 %v589
        %v797 = vpop.f32.mrf.mxu0
        %v798 = vadd.f32 0.0, %v797
        %799 = vmatmul.f32.gmra.mxu0 %v592
        %v800 = vpop.f32.mrf.mxu0
        %v801 = vadd.f32 0.0, %v800
        %802 = vmatmul.f32.gmra.mxu0 %v595
        %v803 = vpop.f32.mrf.mxu0
        %v804 = vadd.f32 0.0, %v803
        %805 = vmatmul.f32.gmra.mxu0 %v598
        %v806 = vpop.f32.mrf.mxu0
        %v807 = vadd.f32 0.0, %v806
        %808 = vmatmul.f32.gmra.mxu0 %v601
        %v809 = vpop.f32.mrf.mxu0
        %v810 = vadd.f32 0.0, %v809
        %811 = vmatmul.f32.gmra.mxu0 %v604
        %v812 = vpop.f32.mrf.mxu0
        %v813 = vadd.f32 0.0, %v812
        %814 = vmatmul.f32.gmra.mxu0 %v607
        %v815 = vpop.f32.mrf.mxu0
        %v816 = vadd.f32 0.0, %v815
        %817 = vmatmul.f32.gmra.mxu0 %v610
        %v818 = vpop.f32.mrf.mxu0
        %v819 = vadd.f32 0.0, %v818
        %820 = vmatmul.f32.gmra.mxu0 %v613
        %v821 = vpop.f32.mrf.mxu0
        %v822 = vadd.f32 0.0, %v821
        %823 = vmatmul.f32.gmra.mxu0 %v616
        %v824 = vpop.f32.mrf.mxu0
        %v825 = vadd.f32 0.0, %v824
        %826 = vmatmul.f32.gmra.mxu0 %v619
        %v827 = vpop.f32.mrf.mxu0
        %v828 = vadd.f32 0.0, %v827
        %829 = vmatmul.f32.gmra.mxu0 %v622
        %v830 = vpop.f32.mrf.mxu0
        %v831 = vadd.f32 0.0, %v830
        %832 = vmatmul.f32.gmra.mxu0 %v625
        %v833 = vpop.f32.mrf.mxu0
        %v834 = vadd.f32 0.0, %v833
        %835 = vmatmul.f32.gmra.mxu0 %v628
        %v836 = vpop.f32.mrf.mxu0
        %v837 = vadd.f32 0.0, %v836
        %838 = vmatmul.f32.gmra.mxu0 %v631
        %v839 = vpop.f32.mrf.mxu0
        %v840 = vadd.f32 0.0, %v839
        %841 = vmatmul.f32.gmra.mxu0 %v634
        %v842 = vpop.f32.mrf.mxu0
        %v843 = vadd.f32 0.0, %v842
        %844 = vmatmul.f32.gmra.mxu0 %v637
        %v845 = vpop.f32.mrf.mxu0
        %v846 = vadd.f32 0.0, %v845
        %847 = vmatmul.f32.gmra.mxu0 %v640
        %v848 = vpop.f32.mrf.mxu0
        %v849 = vadd.f32 0.0, %v848
        %850 = vmatmul.f32.gmra.mxu0 %v643
        %v851 = vpop.f32.mrf.mxu0
        %v852 = vadd.f32 0.0, %v851
        %853 = vmatmul.f32.gmra.mxu0 %v646
        %v854 = vpop.f32.mrf.mxu0
        %v855 = vadd.f32 0.0, %v854
        %856 = vmatmul.f32.gmra.mxu0 %v649
        %v857 = vpop.f32.mrf.mxu0
        %v858 = vadd.f32 0.0, %v857
        %859 = vmatmul.f32.gmra.mxu0 %v652
        %v860 = vpop.f32.mrf.mxu0
        %v861 = vadd.f32 0.0, %v860
        %862 = vmatmul.f32.gmra.mxu0 %v655
        %v863 = vpop.f32.mrf.mxu0
        %v864 = vadd.f32 0.0, %v863
        %865 = vmatmul.f32.gmra.mxu0 %v658
        %v866 = vpop.f32.mrf.mxu0
        %v867 = vadd.f32 0.0, %v866
        %868 = vmatmul.f32.gmra.mxu0 %v661
        %v869 = vpop.f32.mrf.mxu0
        %v870 = vadd.f32 0.0, %v869
        %871 = vmatmul.f32.gmra.mxu0 %v664
        %v872 = vpop.f32.mrf.mxu0
        %v873 = vadd.f32 0.0, %v872
        %874 = vmatmul.f32.gmra.mxu0 %v667
        %v875 = vpop.f32.mrf.mxu0
        %v876 = vadd.f32 0.0, %v875
        %877 = vdwg.mxu0
        %v878 = vld [vmem:[%s380] sm:$0x1]
        %v879 = vld [vmem:[%s380 + $0x1] sm:$0x1]
        %v880 = vld [vmem:[%s380 + $0x2] sm:$0x1]
        %v881 = vld [vmem:[%s380 + $0x3] sm:$0x1]
        %v882 = vld [vmem:[%s387] sm:$0xff]
        %v883 = vld [vmem:[%s387 + $0x8] sm:$0xff]
        %v884 = vld [vmem:[%s387 + $0x10] sm:$0xff]
        %v885 = vld [vmem:[%s387 + $0x18] sm:$0xff]
        %v886 = vld [vmem:[%s387 + $0x20] sm:$0xff]
        %v887 = vld [vmem:[%s387 + $0x28] sm:$0xff]
        %v888 = vld [vmem:[%s387 + $0x30] sm:$0xff]
        %v889 = vld [vmem:[%s387 + $0x38] sm:$0xff]
        %v890 = vld [vmem:[%s387 + $0x40] sm:$0xff]
        %v891 = vld [vmem:[%s387 + $0x48] sm:$0xff]
        %v892 = vld [vmem:[%s387 + $0x50] sm:$0xff]
        %v893 = vld [vmem:[%s387 + $0x58] sm:$0xff]
        %v894 = vld [vmem:[%s387 + $0x60] sm:$0xff]
        %v895 = vld [vmem:[%s387 + $0x68] sm:$0xff]
        %v896 = vld [vmem:[%s387 + $0x70] sm:$0xff]
        %v897 = vld [vmem:[%s387 + $0x78] sm:$0xff]
        %v898 = vld [vmem:[%s387 + $0x80] sm:$0xff]
        %v899 = vld [vmem:[%s387 + $0x88] sm:$0xff]
        %v900 = vld [vmem:[%s387 + $0x90] sm:$0xff]
        %v901 = vld [vmem:[%s387 + $0x98] sm:$0xff]
        %v902 = vld [vmem:[%s387 + $0xa0] sm:$0xff]
        %v903 = vld [vmem:[%s387 + $0xa8] sm:$0xff]
        %v904 = vld [vmem:[%s387 + $0xb0] sm:$0xff]
        %v905 = vld [vmem:[%s387 + $0xb8] sm:$0xff]
        %v906 = vld [vmem:[%s387 + $0xc0] sm:$0xff]
        %v907 = vld [vmem:[%s387 + $0xc8] sm:$0xff]
        %v908 = vld [vmem:[%s387 + $0xd0] sm:$0xff]
        %v909 = vld [vmem:[%s387 + $0xd8] sm:$0xff]
        %v910 = vld [vmem:[%s387 + $0xe0] sm:$0xff]
        %v911 = vld [vmem:[%s387 + $0xe8] sm:$0xff]
        %v912 = vld [vmem:[%s387 + $0xf0] sm:$0xff]
        %v913 = vld [vmem:[%s387 + $0xf8] sm:$0xff]
        %v914 = vld [vmem:[%s387 + $0x100] sm:$0xff]
        %v915 = vld [vmem:[%s387 + $0x108] sm:$0xff]
        %v916 = vld [vmem:[%s387 + $0x110] sm:$0xff]
        %v917 = vld [vmem:[%s387 + $0x118] sm:$0xff]
        %v918 = vld [vmem:[%s387 + $0x120] sm:$0xff]
        %v919 = vld [vmem:[%s387 + $0x128] sm:$0xff]
        %v920 = vld [vmem:[%s387 + $0x130] sm:$0xff]
        %v921 = vld [vmem:[%s387 + $0x138] sm:$0xff]
        %v922 = vld [vmem:[%s387 + $0x140] sm:$0xff]
        %v923 = vld [vmem:[%s387 + $0x148] sm:$0xff]
        %v924 = vld [vmem:[%s387 + $0x150] sm:$0xff]
        %v925 = vld [vmem:[%s387 + $0x158] sm:$0xff]
        %v926 = vld [vmem:[%s387 + $0x160] sm:$0xff]
        %v927 = vld [vmem:[%s387 + $0x168] sm:$0xff]
        %v928 = vld [vmem:[%s387 + $0x170] sm:$0xff]
        %v929 = vld [vmem:[%s387 + $0x178] sm:$0xff]
        %v930 = vld [vmem:[%s387 + $0x180] sm:$0xff]
        %v931 = vld [vmem:[%s387 + $0x188] sm:$0xff]
        %v932 = vld [vmem:[%s387 + $0x190] sm:$0xff]
        %v933 = vld [vmem:[%s387 + $0x198] sm:$0xff]
        %v934 = vld [vmem:[%s387 + $0x1a0] sm:$0xff]
        %v935 = vld [vmem:[%s387 + $0x1a8] sm:$0xff]
        %v936 = vld [vmem:[%s387 + $0x1b0] sm:$0xff]
        %v937 = vld [vmem:[%s387 + $0x1b8] sm:$0xff]
        %v938 = vld [vmem:[%s387 + $0x1c0] sm:$0xff]
        %v939 = vld [vmem:[%s387 + $0x1c8] sm:$0xff]
        %v940 = vld [vmem:[%s387 + $0x1d0] sm:$0xff]
        %v941 = vld [vmem:[%s387 + $0x1d8] sm:$0xff]
        %v942 = vld [vmem:[%s387 + $0x1e0] sm:$0xff]
        %v943 = vld [vmem:[%s387 + $0x1e8] sm:$0xff]
        %v944 = vld [vmem:[%s387 + $0x1f0] sm:$0xff]
        %v945 = vld [vmem:[%s387 + $0x1f8] sm:$0xff]
        %v946 = vadd.f32 %v882, %v687
        %v947 = vadd.f32 %v883, %v690
        %v948 = vadd.f32 %v884, %v693
        %v949 = vadd.f32 %v885, %v696
        %v950 = vadd.f32 %v886, %v699
        %v951 = vadd.f32 %v887, %v702
        %v952 = vadd.f32 %v888, %v705
        %v953 = vadd.f32 %v889, %v708
        %v954 = vadd.f32 %v890, %v711
        %v955 = vadd.f32 %v891, %v714
        %v956 = vadd.f32 %v892, %v717
        %v957 = vadd.f32 %v893, %v720
        %v958 = vadd.f32 %v894, %v723
        %v959 = vadd.f32 %v895, %v726
        %v960 = vadd.f32 %v896, %v729
        %v961 = vadd.f32 %v897, %v732
        %v962 = vadd.f32 %v898, %v735
        %v963 = vadd.f32 %v899, %v738
        %v964 = vadd.f32 %v900, %v741
        %v965 = vadd.f32 %v901, %v744
        %v966 = vadd.f32 %v902, %v747
        %v967 = vadd.f32 %v903, %v750
        %v968 = vadd.f32 %v904, %v753
        %v969 = vadd.f32 %v905, %v756
        %v970 = vadd.f32 %v906, %v759
        %v971 = vadd.f32 %v907, %v762
        %v972 = vadd.f32 %v908, %v765
        %v973 = vadd.f32 %v909, %v768
        %v974 = vadd.f32 %v910, %v771
        %v975 = vadd.f32 %v911, %v774
        %v976 = vadd.f32 %v912, %v777
        %v977 = vadd.f32 %v913, %v780
        %v978 = vadd.f32 %v914, %v783
        %v979 = vadd.f32 %v915, %v786
        %v980 = vadd.f32 %v916, %v789
        %v981 = vadd.f32 %v917, %v792
        %v982 = vadd.f32 %v918, %v795
        %v983 = vadd.f32 %v919, %v798
        %v984 = vadd.f32 %v920, %v801
        %v985 = vadd.f32 %v921, %v804
        %v986 = vadd.f32 %v922, %v807
        %v987 = vadd.f32 %v923, %v810
        %v988 = vadd.f32 %v924, %v813
        %v989 = vadd.f32 %v925, %v816
        %v990 = vadd.f32 %v926, %v819
        %v991 = vadd.f32 %v927, %v822
        %v992 = vadd.f32 %v928, %v825
        %v993 = vadd.f32 %v929, %v828
        %v994 = vadd.f32 %v930, %v831
        %v995 = vadd.f32 %v931, %v834
        %v996 = vadd.f32 %v932, %v837
        %v997 = vadd.f32 %v933, %v840
        %v998 = vadd.f32 %v934, %v843
        %v999 = vadd.f32 %v935, %v846
        %v1000 = vadd.f32 %v936, %v849
        %v1001 = vadd.f32 %v937, %v852
        %v1002 = vadd.f32 %v938, %v855
        %v1003 = vadd.f32 %v939, %v858
        %v1004 = vadd.f32 %v940, %v861
        %v1005 = vadd.f32 %v941, %v864
        %v1006 = vadd.f32 %v942, %v867
        %v1007 = vadd.f32 %v943, %v870
        %v1008 = vadd.f32 %v944, %v873
        %v1009 = vadd.f32 %v945, %v876
        %v1014 = vperm.slane %v878, 0
        %v1015 = vperm.slane %v879, 0
        %v1016 = vperm.slane %v880, 0
        %v1017 = vperm.slane %v881, 0
        %v1022 = vadd.f32 %v946, %v1014
        %v1023 = vadd.f32 %v947, %v1014
        %v1024 = vadd.f32 %v948, %v1014
        %v1025 = vadd.f32 %v949, %v1014
        %v1026 = vadd.f32 %v950, %v1014
        %v1027 = vadd.f32 %v951, %v1014
        %v1028 = vadd.f32 %v952, %v1014
        %v1029 = vadd.f32 %v953, %v1014
        %v1030 = vadd.f32 %v954, %v1014
        %v1031 = vadd.f32 %v955, %v1014
        %v1032 = vadd.f32 %v956, %v1014
        %v1033 = vadd.f32 %v957, %v1014
        %v1034 = vadd.f32 %v958, %v1014
        %v1035 = vadd.f32 %v959, %v1014
        %v1036 = vadd.f32 %v960, %v1014
        %v1037 = vadd.f32 %v961, %v1014
        %v1038 = vadd.f32 %v962, %v1015
        %v1039 = vadd.f32 %v963, %v1015
        %v1040 = vadd.f32 %v964, %v1015
        %v1041 = vadd.f32 %v965, %v1015
        %v1042 = vadd.f32 %v966, %v1015
        %v1043 = vadd.f32 %v967, %v1015
        %v1044 = vadd.f32 %v968, %v1015
        %v1045 = vadd.f32 %v969, %v1015
        %v1046 = vadd.f32 %v970, %v1015
        %v1047 = vadd.f32 %v971, %v1015
        %v1048 = vadd.f32 %v972, %v1015
        %v1049 = vadd.f32 %v973, %v1015
        %v1050 = vadd.f32 %v974, %v1015
        %v1051 = vadd.f32 %v975, %v1015
        %v1052 = vadd.f32 %v976, %v1015
        %v1053 = vadd.f32 %v977, %v1015
        %v1054 = vadd.f32 %v978, %v1016
        %v1055 = vadd.f32 %v979, %v1016
        %v1056 = vadd.f32 %v980, %v1016
        %v1057 = vadd.f32 %v981, %v1016
        %v1058 = vadd.f32 %v982, %v1016
        %v1059 = vadd.f32 %v983, %v1016
        %v1060 = vadd.f32 %v984, %v1016
        %v1061 = vadd.f32 %v985, %v1016
        %v1062 = vadd.f32 %v986, %v1016
        %v1063 = vadd.f32 %v987, %v1016
        %v1064 = vadd.f32 %v988, %v1016
        %v1065 = vadd.f32 %v989, %v1016
        %v1066 = vadd.f32 %v990, %v1016
        %v1067 = vadd.f32 %v991, %v1016
        %v1068 = vadd.f32 %v992, %v1016
        %v1069 = vadd.f32 %v993, %v1016
        %v1070 = vadd.f32 %v994, %v1017
        %v1071 = vadd.f32 %v995, %v1017
        %v1072 = vadd.f32 %v996, %v1017
        %v1073 = vadd.f32 %v997, %v1017
        %v1074 = vadd.f32 %v998, %v1017
        %v1075 = vadd.f32 %v999, %v1017
        %v1076 = vadd.f32 %v1000, %v1017
        %v1077 = vadd.f32 %v1001, %v1017
        %v1078 = vadd.f32 %v1002, %v1017
        %v1079 = vadd.f32 %v1003, %v1017
        %v1080 = vadd.f32 %v1004, %v1017
        %v1081 = vadd.f32 %v1005, %v1017
        %v1082 = vadd.f32 %v1006, %v1017
        %v1083 = vadd.f32 %v1007, %v1017
        %v1084 = vadd.f32 %v1008, %v1017
        %v1085 = vadd.f32 %v1009, %v1017
        %v1086 = vtanh.pop %v1022
        %v1087 = vtanh.pop %v1023
        %v1088 = vtanh.pop %v1024
        %v1089 = vtanh.pop %v1025
        %v1090 = vtanh.pop %v1026
        %v1091 = vtanh.pop %v1027
        %v1092 = vtanh.pop %v1028
        %v1093 = vtanh.pop %v1029
        %v1094 = vtanh.pop %v1030
        %v1095 = vtanh.pop %v1031
        %v1096 = vtanh.pop %v1032
        %v1097 = vtanh.pop %v1033
        %v1098 = vtanh.pop %v1034
        %v1099 = vtanh.pop %v1035
        %v1100 = vtanh.pop %v1036
        %v1101 = vtanh.pop %v1037
        %v1102 = vtanh.pop %v1038
        %v1103 = vtanh.pop %v1039
        %v1104 = vtanh.pop %v1040
        %v1105 = vtanh.pop %v1041
        %v1106 = vtanh.pop %v1042
        %v1107 = vtanh.pop %v1043
        %v1108 = vtanh.pop %v1044
        %v1109 = vtanh.pop %v1045
        %v1110 = vtanh.pop %v1046
        %v1111 = vtanh.pop %v1047
        %v1112 = vtanh.pop %v1048
        %v1113 = vtanh.pop %v1049
        %v1114 = vtanh.pop %v1050
        %v1115 = vtanh.pop %v1051
        %v1116 = vtanh.pop %v1052
        %v1117 = vtanh.pop %v1053
        %v1118 = vtanh.pop %v1054
        %v1119 = vtanh.pop %v1055
        %v1120 = vtanh.pop %v1056
        %v1121 = vtanh.pop %v1057
        %v1122 = vtanh.pop %v1058
        %v1123 = vtanh.pop %v1059
        %v1124 = vtanh.pop %v1060
        %v1125 = vtanh.pop %v1061
        %v1126 = vtanh.pop %v1062
        %v1127 = vtanh.pop %v1063
        %v1128 = vtanh.pop %v1064
        %v1129 = vtanh.pop %v1065
        %v1130 = vtanh.pop %v1066
        %v1131 = vtanh.pop %v1067
        %v1132 = vtanh.pop %v1068
        %v1133 = vtanh.pop %v1069
        %v1134 = vtanh.pop %v1070
        %v1135 = vtanh.pop %v1071
        %v1136 = vtanh.pop %v1072
        %v1137 = vtanh.pop %v1073
        %v1138 = vtanh.pop %v1074
        %v1139 = vtanh.pop %v1075
        %v1140 = vtanh.pop %v1076
        %v1141 = vtanh.pop %v1077
        %v1142 = vtanh.pop %v1078
        %v1143 = vtanh.pop %v1079
        %v1144 = vtanh.pop %v1080
        %v1145 = vtanh.pop %v1081
        %v1146 = vtanh.pop %v1082
        %v1147 = vtanh.pop %v1083
        %v1148 = vtanh.pop %v1084
        %v1149 = vtanh.pop %v1085
        %v1150 = vld [vmem:[%s4] sm:$0x1]
        %v1151 = vld [vmem:[%s399] sm:$0x1]
        %v1152 = vld [vmem:[%s399 + $0x1] sm:$0x1]
        %v1153 = vld [vmem:[%s399 + $0x2] sm:$0x1]
        %v1154 = vld [vmem:[%s399 + $0x3] sm:$0x1]
        %1155 = vmatpush.xpose.msra.mxu0 %v1101
        %1156 = vmatpush.xpose.msra.mxu0 %v1100
        %1157 = vmatpush.xpose.msra.mxu0 %v1099
        %1158 = vmatpush.xpose.msra.mxu0 %v1098
        %1159 = vmatpush.xpose.msra.mxu0 %v1097
        %1160 = vmatpush.xpose.msra.mxu0 %v1096
        %1161 = vmatpush.xpose.msra.mxu0 %v1095
        %1162 = vmatpush.xpose.msra.mxu0 %v1094
        %1163 = vmatpush.xpose.msra.mxu0 %v1093
        %1164 = vmatpush.xpose.msra.mxu0 %v1092
        %1165 = vmatpush.xpose.msra.mxu0 %v1091
        %1166 = vmatpush.xpose.msra.mxu0 %v1090
        %1167 = vmatpush.xpose.msra.mxu0 %v1089
        %1168 = vmatpush.xpose.msra.mxu0 %v1088
        %1169 = vmatpush.xpose.msra.mxu0 %v1087
        %1170 = vmatpush.xpose.msra.mxu0 %v1086
        %1171 = vmatmul.f32.gmra.mxu0 %v1150
        %v1172 = vpop.f32.mrf.mxu0
        %v1173 = vadd.f32 %v1151, %v1172
        %1174 = vdwg.mxu0
        %1175 = vmatpush.xpose.msra.mxu0 %v1117
        %1176 = vmatpush.xpose.msra.mxu0 %v1116
        %1177 = vmatpush.xpose.msra.mxu0 %v1115
        %1178 = vmatpush.xpose.msra.mxu0 %v1114
        %1179 = vmatpush.xpose.msra.mxu0 %v1113
        %1180 = vmatpush.xpose.msra.mxu0 %v1112
        %1181 = vmatpush.xpose.msra.mxu0 %v1111
        %1182 = vmatpush.xpose.msra.mxu0 %v1110
        %1183 = vmatpush.xpose.msra.mxu0 %v1109
        %1184 = vmatpush.xpose.msra.mxu0 %v1108
        %1185 = vmatpush.xpose.msra.mxu0 %v1107
        %1186 = vmatpush.xpose.msra.mxu0 %v1106
        %1187 = vmatpush.xpose.msra.mxu0 %v1105
        %1188 = vmatpush.xpose.msra.mxu0 %v1104
        %1189 = vmatpush.xpose.msra.mxu0 %v1103
        %1190 = vmatpush.xpose.msra.mxu0 %v1102
        %1191 = vmatmul.f32.gmra.mxu0 %v1150
        %v1192 = vpop.f32.mrf.mxu0
        %v1193 = vadd.f32 %v1152, %v1192
        %1194 = vdwg.mxu0
        %1195 = vmatpush.xpose.msra.mxu0 %v1133
        %1196 = vmatpush.xpose.msra.mxu0 %v1132
        %1197 = vmatpush.xpose.msra.mxu0 %v1131
        %1198 = vmatpush.xpose.msra.mxu0 %v1130
        %1199 = vmatpush.xpose.msra.mxu0 %v1129
        %1200 = vmatpush.xpose.msra.mxu0 %v1128
        %1201 = vmatpush.xpose.msra.mxu0 %v1127
        %1202 = vmatpush.xpose.msra.mxu0 %v1126
        %1203 = vmatpush.xpose.msra.mxu0 %v1125
        %1204 = vmatpush.xpose.msra.mxu0 %v1124
        %1205 = vmatpush.xpose.msra.mxu0 %v1123
        %1206 = vmatpush.xpose.msra.mxu0 %v1122
        %1207 = vmatpush.xpose.msra.mxu0 %v1121
        %1208 = vmatpush.xpose.msra.mxu0 %v1120
        %1209 = vmatpush.xpose.msra.mxu0 %v1119
        %1210 = vmatpush.xpose.msra.mxu0 %v1118
        %1211 = vmatmul.f32.gmra.mxu0 %v1150
        %v1212 = vpop.f32.mrf.mxu0
        %v1213 = vadd.f32 %v1153, %v1212
        %1214 = vdwg.mxu0
        %1215 = vmatpush.xpose.msra.mxu0 %v1149
        %1216 = vmatpush.xpose.msra.mxu0 %v1148
        %1217 = vmatpush.xpose.msra.mxu0 %v1147
        %1218 = vmatpush.xpose.msra.mxu0 %v1146
        %1219 = vmatpush.xpose.msra.mxu0 %v1145
        %1220 = vmatpush.xpose.msra.mxu0 %v1144
        %1221 = vmatpush.xpose.msra.mxu0 %v1143
        %1222 = vmatpush.xpose.msra.mxu0 %v1142
        %1223 = vmatpush.xpose.msra.mxu0 %v1141
        %1224 = vmatpush.xpose.msra.mxu0 %v1140
        %1225 = vmatpush.xpose.msra.mxu0 %v1139
        %1226 = vmatpush.xpose.msra.mxu0 %v1138
        %1227 = vmatpush.xpose.msra.mxu0 %v1137
        %1228 = vmatpush.xpose.msra.mxu0 %v1136
        %1229 = vmatpush.xpose.msra.mxu0 %v1135
        %1230 = vmatpush.xpose.msra.mxu0 %v1134
        %1231 = vmatmul.f32.gmra.mxu0 %v1150
        %v1232 = vpop.f32.mrf.mxu0
        %v1233 = vadd.f32 %v1154, %v1232
        %1234 = vdwg.mxu0
        %vm1235 = vcmask 1040384
        %v1236 = vsel %vm1235, %v1173, -inf
        %1237 = vmax.xlane.f32.xlu0 %v1236
        %v1238 = vpop.xlane.xlu0 %1237
        %v1239 = vsel %vm1235, %v1193, -inf
        %1240 = vmax.xlane.f32.xlu0 %v1239
        %v1241 = vpop.xlane.xlu0 %1240
        %v1242 = vsel %vm1235, %v1213, -inf
        %1243 = vmax.xlane.f32.xlu0 %v1242
        %v1244 = vpop.xlane.xlu0 %1243
        %v1245 = vsel %vm1235, %v1233, -inf
        %1246 = vmax.xlane.f32.xlu0 %v1245
        %v1247 = vpop.xlane.xlu0 %1246
        %v1248 = vsub.f32 %v1173, %v1238
        %v1249 = vsub.f32 %v1193, %v1241
        %v1250 = vsub.f32 %v1213, %v1244
        %v1251 = vsub.f32 %v1233, %v1247
        %v1252 = vmul.f32 %v1248, 1.442695
        %v1253 = vpow.pop %v1252
        %v1254 = vmul.f32 %v1249, 1.442695
        %v1255 = vpow.pop %v1254
        %v1256 = vmul.f32 %v1250, 1.442695
        %v1257 = vpow.pop %v1256
        %v1258 = vmul.f32 %v1251, 1.442695
        %v1259 = vpow.pop %v1258
        %v1260 = vsel %vm1235, %v1253, 0.0
        %1261 = vadd.xlane.f32.xlu0 %v1260
        %v1262 = vpop.xlane.xlu0 %1261
        %v1263 = vsel %vm1235, %v1255, 0.0
        %1264 = vadd.xlane.f32.xlu0 %v1263
        %v1265 = vpop.xlane.xlu0 %1264
        %v1266 = vsel %vm1235, %v1257, 0.0
        %1267 = vadd.xlane.f32.xlu0 %v1266
        %v1268 = vpop.xlane.xlu0 %1267
        %v1269 = vsel %vm1235, %v1259, 0.0
        %1270 = vadd.xlane.f32.xlu0 %v1269
        %v1271 = vpop.xlane.xlu0 %1270
        %v1272 = vrcp.pop %v1262
        %v1273 = vrcp.pop %v1265
        %v1274 = vrcp.pop %v1268
        %v1275 = vrcp.pop %v1271
        %v1276 = vmul.f32 %v1253, %v1272
        %v1277 = vmul.f32 %v1255, %v1273
        %v1278 = vmul.f32 %v1257, %v1274
        %v1279 = vmul.f32 %v1259, %v1275
        %v1280 = vld [vmem:[%s406] sm:$0xff]
        %v1281 = vld [vmem:[%s406 + $0x8] sm:$0xff]
        %v1282 = vld [vmem:[%s406 + $0x10] sm:$0xff]
        %v1283 = vld [vmem:[%s406 + $0x18] sm:$0xff]
        %v1284 = vld [vmem:[%s406 + $0x20] sm:$0xff]
        %v1285 = vld [vmem:[%s406 + $0x28] sm:$0xff]
        %v1286 = vld [vmem:[%s406 + $0x30] sm:$0xff]
        %v1287 = vld [vmem:[%s406 + $0x38] sm:$0xff]
        %v1288 = vld [vmem:[%s406 + $0x40] sm:$0xff]
        %v1289 = vld [vmem:[%s406 + $0x48] sm:$0xff]
        %v1290 = vld [vmem:[%s406 + $0x50] sm:$0xff]
        %v1291 = vld [vmem:[%s406 + $0x58] sm:$0xff]
        %v1292 = vld [vmem:[%s406 + $0x60] sm:$0xff]
        %v1293 = vld [vmem:[%s406 + $0x68] sm:$0xff]
        %v1294 = vld [vmem:[%s406 + $0x70] sm:$0xff]
        %v1295 = vld [vmem:[%s406 + $0x78] sm:$0xff]
        %v1296 = vld [vmem:[%s406 + $0x80] sm:$0xff]
        %v1297 = vld [vmem:[%s406 + $0x88] sm:$0xff]
        %v1298 = vld [vmem:[%s406 + $0x90] sm:$0xff]
        %v1299 = vld [vmem:[%s406 + $0x98] sm:$0xff]
        %v1300 = vld [vmem:[%s406 + $0xa0] sm:$0xff]
        %v1301 = vld [vmem:[%s406 + $0xa8] sm:$0xff]
        %v1302 = vld [vmem:[%s406 + $0xb0] sm:$0xff]
        %v1303 = vld [vmem:[%s406 + $0xb8] sm:$0xff]
        %v1304 = vld [vmem:[%s406 + $0xc0] sm:$0xff]
        %v1305 = vld [vmem:[%s406 + $0xc8] sm:$0xff]
        %v1306 = vld [vmem:[%s406 + $0xd0] sm:$0xff]
        %v1307 = vld [vmem:[%s406 + $0xd8] sm:$0xff]
        %v1308 = vld [vmem:[%s406 + $0xe0] sm:$0xff]
        %v1309 = vld [vmem:[%s406 + $0xe8] sm:$0xff]
        %v1310 = vld [vmem:[%s406 + $0xf0] sm:$0xff]
        %v1311 = vld [vmem:[%s406 + $0xf8] sm:$0xff]
        %v1312 = vld [vmem:[%s406 + $0x100] sm:$0xff]
        %v1313 = vld [vmem:[%s406 + $0x108] sm:$0xff]
        %v1314 = vld [vmem:[%s406 + $0x110] sm:$0xff]
        %v1315 = vld [vmem:[%s406 + $0x118] sm:$0xff]
        %v1316 = vld [vmem:[%s406 + $0x120] sm:$0xff]
        %v1317 = vld [vmem:[%s406 + $0x128] sm:$0xff]
        %v1318 = vld [vmem:[%s406 + $0x130] sm:$0xff]
        %v1319 = vld [vmem:[%s406 + $0x138] sm:$0xff]
        %v1320 = vld [vmem:[%s406 + $0x140] sm:$0xff]
        %v1321 = vld [vmem:[%s406 + $0x148] sm:$0xff]
        %v1322 = vld [vmem:[%s406 + $0x150] sm:$0xff]
        %v1323 = vld [vmem:[%s406 + $0x158] sm:$0xff]
        %v1324 = vld [vmem:[%s406 + $0x160] sm:$0xff]
        %v1325 = vld [vmem:[%s406 + $0x168] sm:$0xff]
        %v1326 = vld [vmem:[%s406 + $0x170] sm:$0xff]
        %v1327 = vld [vmem:[%s406 + $0x178] sm:$0xff]
        %v1328 = vld [vmem:[%s406 + $0x180] sm:$0xff]
        %v1329 = vld [vmem:[%s406 + $0x188] sm:$0xff]
        %v1330 = vld [vmem:[%s406 + $0x190] sm:$0xff]
        %v1331 = vld [vmem:[%s406 + $0x198] sm:$0xff]
        %v1332 = vld [vmem:[%s406 + $0x1a0] sm:$0xff]
        %v1333 = vld [vmem:[%s406 + $0x1a8] sm:$0xff]
        %v1334 = vld [vmem:[%s406 + $0x1b0] sm:$0xff]
        %v1335 = vld [vmem:[%s406 + $0x1b8] sm:$0xff]
        %v1336 = vld [vmem:[%s406 + $0x1c0] sm:$0xff]
        %v1337 = vld [vmem:[%s406 + $0x1c8] sm:$0xff]
        %v1338 = vld [vmem:[%s406 + $0x1d0] sm:$0xff]
        %v1339 = vld [vmem:[%s406 + $0x1d8] sm:$0xff]
        %v1340 = vld [vmem:[%s406 + $0x1e0] sm:$0xff]
        %v1341 = vld [vmem:[%s406 + $0x1e8] sm:$0xff]
        %v1342 = vld [vmem:[%s406 + $0x1f0] sm:$0xff]
        %v1343 = vld [vmem:[%s406 + $0x1f8] sm:$0xff]
        %1344 = vmatpush.msra.mxu0 %v1295
        %1345 = vmatpush.msra.mxu0 %v1294
        %1346 = vmatpush.msra.mxu0 %v1293
        %1347 = vmatpush.msra.mxu0 %v1292
        %1348 = vmatpush.msra.mxu0 %v1291
        %1349 = vmatpush.msra.mxu0 %v1290
        %1350 = vmatpush.msra.mxu0 %v1289
        %1351 = vmatpush.msra.mxu0 %v1288
        %1352 = vmatpush.msra.mxu0 %v1287
        %1353 = vmatpush.msra.mxu0 %v1286
        %1354 = vmatpush.msra.mxu0 %v1285
        %1355 = vmatpush.msra.mxu0 %v1284
        %1356 = vmatpush.msra.mxu0 %v1283
        %1357 = vmatpush.msra.mxu0 %v1282
        %1358 = vmatpush.msra.mxu0 %v1281
        %1359 = vmatpush.msra.mxu0 %v1280
        %1360 = vmatmul.f32.gmra.mxu0 %v1276
        %v1361 = vpop.f32.mrf.mxu0
        %v1362 = vadd.f32 0.0, %v1361
        %1363 = vdwg.mxu0
        %1364 = vmatpush.msra.mxu0 %v1311
        %1365 = vmatpush.msra.mxu0 %v1310
        %1366 = vmatpush.msra.mxu0 %v1309
        %1367 = vmatpush.msra.mxu0 %v1308
        %1368 = vmatpush.msra.mxu0 %v1307
        %1369 = vmatpush.msra.mxu0 %v1306
        %1370 = vmatpush.msra.mxu0 %v1305
        %1371 = vmatpush.msra.mxu0 %v1304
        %1372 = vmatpush.msra.mxu0 %v1303
        %1373 = vmatpush.msra.mxu0 %v1302
        %1374 = vmatpush.msra.mxu0 %v1301
        %1375 = vmatpush.msra.mxu0 %v1300
        %1376 = vmatpush.msra.mxu0 %v1299
        %1377 = vmatpush.msra.mxu0 %v1298
        %1378 = vmatpush.msra.mxu0 %v1297
        %1379 = vmatpush.msra.mxu0 %v1296
        %1380 = vmatmul.f32.gmra.mxu0 %v1277
        %v1381 = vpop.f32.mrf.mxu0
        %v1382 = vadd.f32 0.0, %v1381
        %1383 = vdwg.mxu0
        %1384 = vmatpush.msra.mxu0 %v1327
        %1385 = vmatpush.msra.mxu0 %v1326
        %1386 = vmatpush.msra.mxu0 %v1325
        %1387 = vmatpush.msra.mxu0 %v1324
        %1388 = vmatpush.msra.mxu0 %v1323
        %1389 = vmatpush.msra.mxu0 %v1322
        %1390 = vmatpush.msra.mxu0 %v1321
        %1391 = vmatpush.msra.mxu0 %v1320
        %1392 = vmatpush.msra.mxu0 %v1319
        %1393 = vmatpush.msra.mxu0 %v1318
        %1394 = vmatpush.msra.mxu0 %v1317
        %1395 = vmatpush.msra.mxu0 %v1316
        %1396 = vmatpush.msra.mxu0 %v1315
        %1397 = vmatpush.msra.mxu0 %v1314
        %1398 = vmatpush.msra.mxu0 %v1313
        %1399 = vmatpush.msra.mxu0 %v1312
        %1400 = vmatmul.f32.gmra.mxu0 %v1278
        %v1401 = vpop.f32.mrf.mxu0
        %v1402 = vadd.f32 0.0, %v1401
        %1403 = vdwg.mxu0
        %1404 = vmatpush.msra.mxu0 %v1343
        %1405 = vmatpush.msra.mxu0 %v1342
        %1406 = vmatpush.msra.mxu0 %v1341
        %1407 = vmatpush.msra.mxu0 %v1340
        %1408 = vmatpush.msra.mxu0 %v1339
        %1409 = vmatpush.msra.mxu0 %v1338
        %1410 = vmatpush.msra.mxu0 %v1337
        %1411 = vmatpush.msra.mxu0 %v1336
        %1412 = vmatpush.msra.mxu0 %v1335
        %1413 = vmatpush.msra.mxu0 %v1334
        %1414 = vmatpush.msra.mxu0 %v1333
        %1415 = vmatpush.msra.mxu0 %v1332
        %1416 = vmatpush.msra.mxu0 %v1331
        %1417 = vmatpush.msra.mxu0 %v1330
        %1418 = vmatpush.msra.mxu0 %v1329
        %1419 = vmatpush.msra.mxu0 %v1328
        %1420 = vmatmul.f32.gmra.mxu0 %v1279
        %v1421 = vpop.f32.mrf.mxu0
        %v1422 = vadd.f32 0.0, %v1421
        %1423 = vdwg.mxu0
        %vm1424 = vcmask 253952
        %1425 = vst.msk [vmem:[%s369] sm:$0x1] %vm1424, %v1362
        %1426 = vst.msk [vmem:[%s369 + $0x1] sm:$0x1] %vm1424, %v1382
        %1427 = vst.msk [vmem:[%s369 + $0x2] sm:$0x1] %vm1424, %v1402
        %1428 = vst.msk [vmem:[%s369 + $0x3] sm:$0x1] %vm1424, %v1422
        %1429 = vst [vmem:[%s376] sm:$0x1] %v1276
        %1430 = vst [vmem:[%s376 + $0x1] sm:$0x1] %v1277
        %1431 = vst [vmem:[%s376 + $0x2] sm:$0x1] %v1278
        %1432 = vst [vmem:[%s376 + $0x3] sm:$0x1] %v1279
        %s1433 = sand.u32 %s206, 1
        %s1434 = scalar_lea.sflag [#allocation3], %s1433
        %s1435 = sand.u32 %s206, 1
        %s1436 = smul.addr %s1435, 4
        %s1437 = scalar_lea.vmem [#allocation2], %s1436
        %s1438 = sand.u32 %s232, 1
        %s1439 = scalar_lea.sflag [#allocation5], %s1438
        %s1440 = sand.u32 %s232, 1
        %s1441 = smul.addr %s1440, 4
        %s1442 = scalar_lea.vmem [#allocation4], %s1441
        // Predicated region
        $region49: #{tpu_custom_call.1} parent=47 // pred_check
          %p1443 = pneg %p216
        $region50: #{tpu_custom_call.1} parent=47 // pred_check_branch
          %1445 = sbr.rel (%p1443) target = $region52
        $region51: #{tpu_custom_call.1} parent=47 // pred_region
          %s1446 = smul.u32 4, %s26
          %1448 = vsyncadd %s1434, 0
          %s1449 = scalar_lea.hbm %s7, %s1446
          %s1450 = sshll.u32 %s1437, 4
          %s1451 = int_to_ptr.vmem [resolvable:$true] %s1450
          %s1452 = sshll.u32 %s1449, 4
          %s1453 = int_to_ptr.hbm [resolvable:$true] %s1452
          %1458 = dma.vmem_to_hbm [thread:$0]  %s1451, 64, %s1453, %s1434, 16, 16, 1
        $region52: #{tpu_custom_call.1} parent=47 // pred_fallthru
          _
        // Predicated region
        $region53: #{tpu_custom_call.1} parent=47 // pred_check
          %p1459 = pneg %p242
        $region54: #{tpu_custom_call.1} parent=47 // pred_check_branch
          %1461 = sbr.rel (%p1459) target = $region56
        $region55: #{tpu_custom_call.1} parent=47 // pred_region
          %s1462 = smul.u32 4, %s26
          %1464 = vsyncadd %s1439, 0
          %s1465 = scalar_lea.hbm %s8, %s1462
          %s1466 = sshll.u32 %s1442, 4
          %s1467 = int_to_ptr.vmem [resolvable:$true] %s1466
          %s1468 = sshll.u32 %s1465, 4
          %s1469 = int_to_ptr.hbm [resolvable:$true] %s1468
          %1474 = dma.vmem_to_hbm [thread:$0]  %s1467, 64, %s1469, %s1439, 16, 16, 1
        $region56: #{tpu_custom_call.1} parent=47 // pred_fallthru
          _
      $region48: #{tpu_custom_call.1} parent=5 // pred_fallthru
        _
      %p1475 = scmp.le.s32.totalorder 2, %s21
      // Predicated region
      $region57: #{tpu_custom_call.1} parent=5 // pred_check
        %p1476 = pneg %p1475
      $region58: #{tpu_custom_call.1} parent=5 // pred_check_branch
        %1478 = sbr.rel (%p1476) target = $region60
      $region59: #{tpu_custom_call.1} parent=5 // pred_region
        %s1479 = ssub.s32 %s21, 2
        // Predicated region
        $region61: #{tpu_custom_call.1} parent=59 // pred_check
          %p1480 = pneg %p222
        $region62: #{tpu_custom_call.1} parent=59 // pred_check_branch
          %1482 = sbr.rel (%p1480) target = $region64
        $region63: #{tpu_custom_call.1} parent=59 // pred_region
          %s1483 = sand.u32 %s207, 1
          %s1484 = scalar_lea.sflag [#allocation3], %s1483
          %s1485 = sand.u32 %s207, 1
          %s1486 = smul.addr %s1485, 4
          %s1487 = scalar_lea.vmem [#allocation2], %s1486
          %1489 = dma.done %s1484, 64
        $region64: #{tpu_custom_call.1} parent=59 // pred_fallthru
          _
        // Predicated region
        $region65: #{tpu_custom_call.1} parent=59 // pred_check
          %p1490 = pneg %p248
        $region66: #{tpu_custom_call.1} parent=59 // pred_check_branch
          %1492 = sbr.rel (%p1490) target = $region68
        $region67: #{tpu_custom_call.1} parent=59 // pred_region
          %s1493 = sand.u32 %s233, 1
          %s1494 = scalar_lea.sflag [#allocation5], %s1493
          %s1495 = sand.u32 %s233, 1
          %s1496 = smul.addr %s1495, 4
          %s1497 = scalar_lea.vmem [#allocation4], %s1496
          %1499 = dma.done %s1494, 64
        $region68: #{tpu_custom_call.1} parent=59 // pred_fallthru
          _
      $region60: #{tpu_custom_call.1} parent=5 // pred_fallthru
        _
    $region6: #{tpu_custom_call.1} parent=1 // loop_footer
      %s25 = sadd.s32 1, %s21
    $region7: #{tpu_custom_call.1} parent=1 // loop_footer_branch
      %20 = sbr.rel target = $region3
    $region8: #{tpu_custom_call.1} parent=1 // loop_exit
      _
    %1500 = vsyncpa [#allocation3], 1
    %s1501 = scalar_lea.sflag [#allocation3], 1
    %1502 = vsyncpa %s1501, 1
    %1503 = vsyncpa [#allocation5], 1
    %s1504 = scalar_lea.sflag [#allocation5], 1
    %1505 = vsyncpa %s1504, 1

</llo_original>
